<compile_context>
chip_gen: v5e
topology: v5e:2x2
jax: 0.10.0
libtpu: 0.0.40
codegen_flags: <defaults>
</compile_context>

<pallas_src>
import numpy as np
import jax
import jax.numpy as jnp
from jax.experimental import pallas as pl
from jax.experimental.pallas import tpu as pltpu

EPS = 1e-5
HIGHEST = jax.lax.Precision.HIGHEST


def make_resblock_kernel(N, H, W, inc, midc):
    """Fused ResBlock kernel body for fixed (N, H, W, inc, midc), channels-on-sublane layout."""
    HW = H * W
    NHW = N * HW
    inv_cnt = 1.0 / float(NHW)

    def _dot(a, b):
        return jnp.dot(a, b, precision=HIGHEST, preferred_element_type=jnp.float32)

    def bn_relu(y, g, b):
        # Training-mode BatchNorm (biased batch variance). Channels are sublane rows, pixels
        # are lanes, so per-channel stats are cross-lane reductions. Centered variance formula.
        mu = jnp.sum(y, axis=1, keepdims=True) * inv_cnt            # (C, 1)
        d = y - mu
        var = jnp.sum(d * d, axis=1, keepdims=True) * inv_cnt       # (C, 1)
        xhat = d * jax.lax.rsqrt(var + EPS)
        return jnp.maximum(xhat * g + b, 0.0)

    def kernel(x_ref, masks_ref,
               w1_ref, g1_ref, be1_ref,
               w2_ref, g2_ref, be2_ref,
               w3_ref, g3_ref, be3_ref,
               o_ref):
        # x_ref: (N, inc, HW).  Lane-concat the per-image (inc, HW) slabs (256 is a multiple of
        # 128, so this is pure vreg placement) -> (inc, NHW) with pixel order (n, h, w).
        x_all = jnp.concatenate([x_ref[n] for n in range(N)], axis=1)

        # --- conv1: 1x1 (inc -> midc); bias dropped (cancels in training-mode BN) ---
        h1 = bn_relu(_dot(w1_ref[...], x_all), g1_ref[...], be1_ref[...])     # (midc, NHW)

        # --- conv2: 3x3, padding 1 (midc -> midc) ---
        # Nine lane rotations of h1 (view[p] = h1[p + dy*W + dx]; np.roll semantics => shift
        # = -offset), boundary/wraparound-masked with precomputed (1, NHW) masks, stacked along
        # sublanes into one (9*midc, NHW) LHS -> single K=9*midc MXU pass.
        pieces = []
        for dy in (-1, 0, 1):
            for dx in (-1, 0, 1):
                off = dy * W + dx
                t = (dy + 1) * 3 + (dx + 1)
                if off == 0:
                    pieces.append(h1)
                else:
                    view = pltpu.roll(h1, (-off) % NHW, axis=1)                # XLU lane rotate
                    pieces.append(view * masks_ref[pl.ds(t, 1), :])            # (midc, NHW)
        lhs2 = jnp.concatenate(pieces, axis=0)                                 # (9*midc, NHW)
        h2 = bn_relu(_dot(w2_ref[...], lhs2), g2_ref[...], be2_ref[...])       # (midc, NHW)

        # --- conv3: 1x1 (midc -> inc) ---
        h3 = bn_relu(_dot(w3_ref[...], h2), g3_ref[...], be3_ref[...])         # (inc, NHW)

        # Residual add: re-read x_ref per image (keeps x out of the register file during the
        # matmuls); 256-lane-wide unmasked-in-lanes stores per image.
        for n in range(N):
            o_ref[n] = h3[:, n * HW:(n + 1) * HW] + x_ref[n]

    return kernel


def build_kernel_params(params):
    """Host-side weight repacking (tiny, done once). Conv biases are dropped: they cancel
    exactly in the training-mode BatchNorm that follows each conv."""
    w1 = np.asarray(params["w1"], np.float32)[:, :, 0, 0]          # (midc, inc)
    w2 = np.asarray(params["w2"], np.float32)                      # (midc, midc, 3, 3)
    w3 = np.asarray(params["w3"], np.float32)[:, :, 0, 0]          # (inc, midc)
    midc = w1.shape[0]

    # Columns ordered (ky, kx, cin) to match the sublane-stacking order of the taps.
    w2m = np.transpose(w2, (0, 2, 3, 1)).reshape(midc, 9 * midc)   # (midc, 9*midc)

    def col(v):
        return np.asarray(v, np.float32)[:, None]                  # (C, 1) per-channel column

    kp = dict(w1=w1, w2=w2m, w3=w3,
              g1=col(params["g1"]), be1=col(params["be1"]),
              g2=col(params["g2"]), be2=col(params["be2"]),
              g3=col(params["g3"]), be3=col(params["be3"]))
    return {k: jnp.asarray(v, jnp.float32) for k, v in kp.items()}


def build_tap_masks(N, H, W):
    """(9, N*H*W) f32 validity masks for the 3x3 taps (zero-padding + roll-wraparound kill),
    precomputed host-side so no iota/div/mod runs on the VALU inside the kernel."""
    HW = H * W
    NHW = N * HW
    p = np.arange(NHW)
    hh = (p // W) % H
    ww = p % W
    m = np.ones((9, NHW), np.float32)
    for dy in (-1, 0, 1):
        for dx in (-1, 0, 1):
            t = (dy + 1) * 3 + (dx + 1)
            valid = (hh + dy >= 0) & (hh + dy < H) & (ww + dx >= 0) & (ww + dx < W)
            m[t] = valid.astype(np.float32)
    return jnp.asarray(m)


def resblock_pallas(x_nchw, kp, masks):
    N, C, H, W = x_nchw.shape
    HW = H * W

    # Pure reshape (no transpose, no data movement): per-image slab x3d[n] is already
    # (channels, pixels), matching the kernel layout.
    x3d = x_nchw.reshape(N, C, HW).astype(jnp.float32)

    kernel = make_resblock_kernel(N, H, W, C, kp["w1"].shape[0])
    vmem = pl.BlockSpec(memory_space=pltpu.MemorySpace.VMEM)
    args = (x3d, masks,
            kp["w1"], kp["g1"], kp["be1"],
            kp["w2"], kp["g2"], kp["be2"],
            kp["w3"], kp["g3"], kp["be3"])

    out3d = pl.pallas_call(
        kernel,
        out_shape=jax.ShapeDtypeStruct((N, C, HW), jnp.float32),
        in_specs=[vmem] * len(args),
        out_specs=vmem,
        input_output_aliases={0: 0},   # output reuses the input HBM buffer (same shape/dtype)
    )(*args)

    return out3d.reshape(N, C, H, W)


def resblock_reference(x, p):
    dn = ('NCHW', 'OIHW', 'NCHW')

    def bn_relu(y, g, b):
        mu = jnp.mean(y, axis=(0, 2, 3), keepdims=True)
        var = jnp.mean((y - mu) ** 2, axis=(0, 2, 3), keepdims=True)
        yh = (y - mu) * jax.lax.rsqrt(var + EPS)
        return jnp.maximum(yh * g.reshape(1, -1, 1, 1) + b.reshape(1, -1, 1, 1), 0.0)

    h = jax.lax.conv_general_dilated(x, p["w1"], (1, 1), 'VALID',
                                     dimension_numbers=dn, precision=HIGHEST)
    h = bn_relu(h + p["b1"].reshape(1, -1, 1, 1), p["g1"], p["be1"])
    h = jax.lax.conv_general_dilated(h, p["w2"], (1, 1), ((1, 1), (1, 1)),
                                     dimension_numbers=dn, precision=HIGHEST)
    h = bn_relu(h + p["b2"].reshape(1, -1, 1, 1), p["g2"], p["be2"])
    h = jax.lax.conv_general_dilated(h, p["w3"], (1, 1), 'VALID',
                                     dimension_numbers=dn, precision=HIGHEST)
    h = bn_relu(h + p["b3"].reshape(1, -1, 1, 1), p["g3"], p["be3"])
    return h + x


if __name__ == "__main__":
    N, inc, midc, H, W = 2, 4, 8, 16, 16

    key = jax.random.PRNGKey(0)
    ks = jax.random.split(key, 16)
    x = jax.random.normal(ks[0], (N, inc, H, W), jnp.float32)

    params = {
        "w1": 0.2 * jax.random.normal(ks[1], (midc, inc, 1, 1), jnp.float32),
        "b1": 0.1 * jax.random.normal(ks[2], (midc,), jnp.float32),
        "g1": 1.0 + 0.1 * jax.random.normal(ks[3], (midc,), jnp.float32),
        "be1": 0.1 * jax.random.normal(ks[4], (midc,), jnp.float32),
        "w2": 0.2 * jax.random.normal(ks[5], (midc, midc, 3, 3), jnp.float32),
        "b2": 0.1 * jax.random.normal(ks[6], (midc,), jnp.float32),
        "g2": 1.0 + 0.1 * jax.random.normal(ks[7], (midc,), jnp.float32),
        "be2": 0.1 * jax.random.normal(ks[8], (midc,), jnp.float32),
        "w3": 0.2 * jax.random.normal(ks[9], (inc, midc, 1, 1), jnp.float32),
        "b3": 0.1 * jax.random.normal(ks[10], (inc,), jnp.float32),
        "g3": 1.0 + 0.1 * jax.random.normal(ks[11], (inc,), jnp.float32),
        "be3": 0.1 * jax.random.normal(ks[12], (inc,), jnp.float32),
    }

    kp = build_kernel_params(params)
    masks = build_tap_masks(N, H, W)

    out = resblock_pallas(x, kp, masks)
    out = jax.block_until_ready(out)

    ref = jax.block_until_ready(resblock_reference(x, params))
    err = float(jnp.max(jnp.abs(out - ref)))
    assert out.shape == (N, inc, H, W)
    assert err < 2e-3, f"max abs error {err}"

    print("KERNEL_OK")
</pallas_src>

<mosaic_0001>
module attributes {stable_mosaic.version = 11 : i64} {
  func.func @kernel(%arg0: memref<2x4x256xf32, #tpu.memory_space<vmem>>, %arg1: memref<9x512xf32, #tpu.memory_space<vmem>>, %arg2: memref<8x4xf32, #tpu.memory_space<vmem>>, %arg3: memref<8x1xf32, #tpu.memory_space<vmem>>, %arg4: memref<8x1xf32, #tpu.memory_space<vmem>>, %arg5: memref<8x72xf32, #tpu.memory_space<vmem>>, %arg6: memref<8x1xf32, #tpu.memory_space<vmem>>, %arg7: memref<8x1xf32, #tpu.memory_space<vmem>>, %arg8: memref<4x8xf32, #tpu.memory_space<vmem>>, %arg9: memref<4x1xf32, #tpu.memory_space<vmem>>, %arg10: memref<4x1xf32, #tpu.memory_space<vmem>>, %arg11: memref<2x4x256xf32, #tpu.memory_space<vmem>>) attributes {dimension_semantics = [], scalar_prefetch = 0 : i64, scratch_operands = 0 : i64, tpu.core_type = #tpu.core_type<tc>} {
    %c0 = arith.constant 0 : index
    %c0_0 = arith.constant 0 : index
    %c0_1 = arith.constant 0 : index
    %0 = vector.load %arg0[%c0, %c0_0, %c0_1] : memref<2x4x256xf32, #tpu.memory_space<vmem>>, vector<1x4x256xf32>
    %1 = vector.shape_cast %0 : vector<1x4x256xf32> to vector<4x256xf32>
    %c1 = arith.constant 1 : index
    %c0_2 = arith.constant 0 : index
    %c0_3 = arith.constant 0 : index
    %2 = vector.load %arg0[%c1, %c0_2, %c0_3] : memref<2x4x256xf32, #tpu.memory_space<vmem>>, vector<1x4x256xf32>
    %3 = vector.shape_cast %2 : vector<1x4x256xf32> to vector<4x256xf32>
    %4 = tpu.concatenate %1, %3 in 1 : vector<4x256xf32>, vector<4x256xf32> -> vector<4x512xf32>
    %c0_4 = arith.constant 0 : index
    %c0_5 = arith.constant 0 : index
    %5 = vector.load %arg2[%c0_4, %c0_5] : memref<8x4xf32, #tpu.memory_space<vmem>>, vector<8x4xf32>
    %cst = arith.constant dense<0.000000e+00> : vector<8x512xf32>
    %6 = tpu.matmul %5, %4, %cst {dimension_numbers = #tpu.dot_dimension_numbers<[1], [0], [0], [1], [0, 0, 1, 1], [], []>, precision = #tpu.contract_precision<fp32>} : vector<8x4xf32>, vector<4x512xf32>, vector<8x512xf32> -> vector<8x512xf32>
    %c0_6 = arith.constant 0 : index
    %c0_7 = arith.constant 0 : index
    %7 = vector.load %arg3[%c0_6, %c0_7] : memref<8x1xf32, #tpu.memory_space<vmem>>, vector<8x1xf32>
    %c0_8 = arith.constant 0 : index
    %c0_9 = arith.constant 0 : index
    %8 = vector.load %arg4[%c0_8, %c0_9] : memref<8x1xf32, #tpu.memory_space<vmem>>, vector<8x1xf32>
    %cst_10 = arith.constant dense<0.000000e+00> : vector<8xf32>
    %9 = vector.multi_reduction <add>, %6, %cst_10 [1] : vector<8x512xf32> to vector<8xf32>
    %10 = vector.shape_cast %9 : vector<8xf32> to vector<8x1xf32>
    %cst_11 = arith.constant 0.001953125 : f32
    %11 = vector.broadcast %cst_11 : f32 to vector<8x1xf32>
    %12 = arith.mulf %10, %11 : vector<8x1xf32>
    %13 = vector.broadcast %12 : vector<8x1xf32> to vector<8x512xf32>
    %14 = arith.subf %6, %13 : vector<8x512xf32>
    %15 = arith.mulf %14, %14 : vector<8x512xf32>
    %cst_12 = arith.constant dense<0.000000e+00> : vector<8xf32>
    %16 = vector.multi_reduction <add>, %15, %cst_12 [1] : vector<8x512xf32> to vector<8xf32>
    %17 = vector.shape_cast %16 : vector<8xf32> to vector<8x1xf32>
    %cst_13 = arith.constant 0.001953125 : f32
    %18 = vector.broadcast %cst_13 : f32 to vector<8x1xf32>
    %19 = arith.mulf %17, %18 : vector<8x1xf32>
    %cst_14 = arith.constant 9.99999974E-6 : f32
    %20 = vector.broadcast %cst_14 : f32 to vector<8x1xf32>
    %21 = arith.addf %19, %20 : vector<8x1xf32>
    %22 = math.rsqrt %21 : vector<8x1xf32>
    %23 = vector.broadcast %22 : vector<8x1xf32> to vector<8x512xf32>
    %24 = arith.mulf %14, %23 : vector<8x512xf32>
    %25 = vector.broadcast %7 : vector<8x1xf32> to vector<8x512xf32>
    %26 = arith.mulf %24, %25 : vector<8x512xf32>
    %27 = vector.broadcast %8 : vector<8x1xf32> to vector<8x512xf32>
    %28 = arith.addf %26, %27 : vector<8x512xf32>
    %cst_15 = arith.constant 0.000000e+00 : f32
    %29 = vector.broadcast %cst_15 : f32 to vector<8x512xf32>
    %30 = arith.maximumf %28, %29 : vector<8x512xf32>
    %c17_i32 = arith.constant 17 : i32
    %31 = tpu.dynamic_rotate %30 by %c17_i32 dim 1 : vector<8x512xf32>, i32 -> vector<8x512xf32>
    %c0_16 = arith.constant 0 : index
    %c0_17 = arith.constant 0 : index
    %32 = vector.load %arg1[%c0_16, %c0_17] : memref<9x512xf32, #tpu.memory_space<vmem>>, vector<1x512xf32>
    %33 = vector.broadcast %32 : vector<1x512xf32> to vector<8x512xf32>
    %34 = arith.mulf %31, %33 : vector<8x512xf32>
    %c16_i32 = arith.constant 16 : i32
    %35 = tpu.dynamic_rotate %30 by %c16_i32 dim 1 : vector<8x512xf32>, i32 -> vector<8x512xf32>
    %c1_18 = arith.constant 1 : index
    %c0_19 = arith.constant 0 : index
    %36 = vector.load %arg1[%c1_18, %c0_19] : memref<9x512xf32, #tpu.memory_space<vmem>>, vector<1x512xf32>
    %37 = vector.broadcast %36 : vector<1x512xf32> to vector<8x512xf32>
    %38 = arith.mulf %35, %37 : vector<8x512xf32>
    %c15_i32 = arith.constant 15 : i32
    %39 = tpu.dynamic_rotate %30 by %c15_i32 dim 1 : vector<8x512xf32>, i32 -> vector<8x512xf32>
    %c2 = arith.constant 2 : index
    %c0_20 = arith.constant 0 : index
    %40 = vector.load %arg1[%c2, %c0_20] : memref<9x512xf32, #tpu.memory_space<vmem>>, vector<1x512xf32>
    %41 = vector.broadcast %40 : vector<1x512xf32> to vector<8x512xf32>
    %42 = arith.mulf %39, %41 : vector<8x512xf32>
    %c1_i32 = arith.constant 1 : i32
    %43 = tpu.dynamic_rotate %30 by %c1_i32 dim 1 : vector<8x512xf32>, i32 -> vector<8x512xf32>
    %c3 = arith.constant 3 : index
    %c0_21 = arith.constant 0 : index
    %44 = vector.load %arg1[%c3, %c0_21] : memref<9x512xf32, #tpu.memory_space<vmem>>, vector<1x512xf32>
    %45 = vector.broadcast %44 : vector<1x512xf32> to vector<8x512xf32>
    %46 = arith.mulf %43, %45 : vector<8x512xf32>
    %c511_i32 = arith.constant 511 : i32
    %47 = tpu.dynamic_rotate %30 by %c511_i32 dim 1 : vector<8x512xf32>, i32 -> vector<8x512xf32>
    %c5 = arith.constant 5 : index
    %c0_22 = arith.constant 0 : index
    %48 = vector.load %arg1[%c5, %c0_22] : memref<9x512xf32, #tpu.memory_space<vmem>>, vector<1x512xf32>
    %49 = vector.broadcast %48 : vector<1x512xf32> to vector<8x512xf32>
    %50 = arith.mulf %47, %49 : vector<8x512xf32>
    %c497_i32 = arith.constant 497 : i32
    %51 = tpu.dynamic_rotate %30 by %c497_i32 dim 1 : vector<8x512xf32>, i32 -> vector<8x512xf32>
    %c6 = arith.constant 6 : index
    %c0_23 = arith.constant 0 : index
    %52 = vector.load %arg1[%c6, %c0_23] : memref<9x512xf32, #tpu.memory_space<vmem>>, vector<1x512xf32>
    %53 = vector.broadcast %52 : vector<1x512xf32> to vector<8x512xf32>
    %54 = arith.mulf %51, %53 : vector<8x512xf32>
    %c496_i32 = arith.constant 496 : i32
    %55 = tpu.dynamic_rotate %30 by %c496_i32 dim 1 : vector<8x512xf32>, i32 -> vector<8x512xf32>
    %c7 = arith.constant 7 : index
    %c0_24 = arith.constant 0 : index
    %56 = vector.load %arg1[%c7, %c0_24] : memref<9x512xf32, #tpu.memory_space<vmem>>, vector<1x512xf32>
    %57 = vector.broadcast %56 : vector<1x512xf32> to vector<8x512xf32>
    %58 = arith.mulf %55, %57 : vector<8x512xf32>
    %c495_i32 = arith.constant 495 : i32
    %59 = tpu.dynamic_rotate %30 by %c495_i32 dim 1 : vector<8x512xf32>, i32 -> vector<8x512xf32>
    %c8 = arith.constant 8 : index
    %c0_25 = arith.constant 0 : index
    %60 = vector.load %arg1[%c8, %c0_25] : memref<9x512xf32, #tpu.memory_space<vmem>>, vector<1x512xf32>
    %61 = vector.broadcast %60 : vector<1x512xf32> to vector<8x512xf32>
    %62 = arith.mulf %59, %61 : vector<8x512xf32>
    %63 = tpu.concatenate %34, %38, %42, %46, %30, %50, %54, %58, %62 in 0 : vector<8x512xf32>, vector<8x512xf32>, vector<8x512xf32>, vector<8x512xf32>, vector<8x512xf32>, vector<8x512xf32>, vector<8x512xf32>, vector<8x512xf32>, vector<8x512xf32> -> vector<72x512xf32>
    %c0_26 = arith.constant 0 : index
    %c0_27 = arith.constant 0 : index
    %64 = vector.load %arg5[%c0_26, %c0_27] : memref<8x72xf32, #tpu.memory_space<vmem>>, vector<8x72xf32>
    %cst_28 = arith.constant dense<0.000000e+00> : vector<8x512xf32>
    %65 = tpu.matmul %64, %63, %cst_28 {dimension_numbers = #tpu.dot_dimension_numbers<[1], [0], [0], [1], [0, 0, 1, 1], [], []>, precision = #tpu.contract_precision<fp32>} : vector<8x72xf32>, vector<72x512xf32>, vector<8x512xf32> -> vector<8x512xf32>
    %c0_29 = arith.constant 0 : index
    %c0_30 = arith.constant 0 : index
    %66 = vector.load %arg6[%c0_29, %c0_30] : memref<8x1xf32, #tpu.memory_space<vmem>>, vector<8x1xf32>
    %c0_31 = arith.constant 0 : index
    %c0_32 = arith.constant 0 : index
    %67 = vector.load %arg7[%c0_31, %c0_32] : memref<8x1xf32, #tpu.memory_space<vmem>>, vector<8x1xf32>
    %cst_33 = arith.constant dense<0.000000e+00> : vector<8xf32>
    %68 = vector.multi_reduction <add>, %65, %cst_33 [1] : vector<8x512xf32> to vector<8xf32>
    %69 = vector.shape_cast %68 : vector<8xf32> to vector<8x1xf32>
    %cst_34 = arith.constant 0.001953125 : f32
    %70 = vector.broadcast %cst_34 : f32 to vector<8x1xf32>
    %71 = arith.mulf %69, %70 : vector<8x1xf32>
    %72 = vector.broadcast %71 : vector<8x1xf32> to vector<8x512xf32>
    %73 = arith.subf %65, %72 : vector<8x512xf32>
    %74 = arith.mulf %73, %73 : vector<8x512xf32>
    %cst_35 = arith.constant dense<0.000000e+00> : vector<8xf32>
    %75 = vector.multi_reduction <add>, %74, %cst_35 [1] : vector<8x512xf32> to vector<8xf32>
    %76 = vector.shape_cast %75 : vector<8xf32> to vector<8x1xf32>
    %cst_36 = arith.constant 0.001953125 : f32
    %77 = vector.broadcast %cst_36 : f32 to vector<8x1xf32>
    %78 = arith.mulf %76, %77 : vector<8x1xf32>
    %cst_37 = arith.constant 9.99999974E-6 : f32
    %79 = vector.broadcast %cst_37 : f32 to vector<8x1xf32>
    %80 = arith.addf %78, %79 : vector<8x1xf32>
    %81 = math.rsqrt %80 : vector<8x1xf32>
    %82 = vector.broadcast %81 : vector<8x1xf32> to vector<8x512xf32>
    %83 = arith.mulf %73, %82 : vector<8x512xf32>
    %84 = vector.broadcast %66 : vector<8x1xf32> to vector<8x512xf32>
    %85 = arith.mulf %83, %84 : vector<8x512xf32>
    %86 = vector.broadcast %67 : vector<8x1xf32> to vector<8x512xf32>
    %87 = arith.addf %85, %86 : vector<8x512xf32>
    %cst_38 = arith.constant 0.000000e+00 : f32
    %88 = vector.broadcast %cst_38 : f32 to vector<8x512xf32>
    %89 = arith.maximumf %87, %88 : vector<8x512xf32>
    %c0_39 = arith.constant 0 : index
    %c0_40 = arith.constant 0 : index
    %90 = vector.load %arg8[%c0_39, %c0_40] : memref<4x8xf32, #tpu.memory_space<vmem>>, vector<4x8xf32>
    %cst_41 = arith.constant dense<0.000000e+00> : vector<4x512xf32>
    %91 = tpu.matmul %90, %89, %cst_41 {dimension_numbers = #tpu.dot_dimension_numbers<[1], [0], [0], [1], [0, 0, 1, 1], [], []>, precision = #tpu.contract_precision<fp32>} : vector<4x8xf32>, vector<8x512xf32>, vector<4x512xf32> -> vector<4x512xf32>
    %c0_42 = arith.constant 0 : index
    %c0_43 = arith.constant 0 : index
    %92 = vector.load %arg9[%c0_42, %c0_43] : memref<4x1xf32, #tpu.memory_space<vmem>>, vector<4x1xf32>
    %c0_44 = arith.constant 0 : index
    %c0_45 = arith.constant 0 : index
    %93 = vector.load %arg10[%c0_44, %c0_45] : memref<4x1xf32, #tpu.memory_space<vmem>>, vector<4x1xf32>
    %cst_46 = arith.constant dense<0.000000e+00> : vector<4xf32>
    %94 = vector.multi_reduction <add>, %91, %cst_46 [1] : vector<4x512xf32> to vector<4xf32>
    %95 = vector.shape_cast %94 : vector<4xf32> to vector<4x1xf32>
    %cst_47 = arith.constant 0.001953125 : f32
    %96 = vector.broadcast %cst_47 : f32 to vector<4x1xf32>
    %97 = arith.mulf %95, %96 : vector<4x1xf32>
    %98 = vector.broadcast %97 : vector<4x1xf32> to vector<4x512xf32>
    %99 = arith.subf %91, %98 : vector<4x512xf32>
    %100 = arith.mulf %99, %99 : vector<4x512xf32>
    %cst_48 = arith.constant dense<0.000000e+00> : vector<4xf32>
    %101 = vector.multi_reduction <add>, %100, %cst_48 [1] : vector<4x512xf32> to vector<4xf32>
    %102 = vector.shape_cast %101 : vector<4xf32> to vector<4x1xf32>
    %cst_49 = arith.constant 0.001953125 : f32
    %103 = vector.broadcast %cst_49 : f32 to vector<4x1xf32>
    %104 = arith.mulf %102, %103 : vector<4x1xf32>
    %cst_50 = arith.constant 9.99999974E-6 : f32
    %105 = vector.broadcast %cst_50 : f32 to vector<4x1xf32>
    %106 = arith.addf %104, %105 : vector<4x1xf32>
    %107 = math.rsqrt %106 : vector<4x1xf32>
    %108 = vector.broadcast %107 : vector<4x1xf32> to vector<4x512xf32>
    %109 = arith.mulf %99, %108 : vector<4x512xf32>
    %110 = vector.broadcast %92 : vector<4x1xf32> to vector<4x512xf32>
    %111 = arith.mulf %109, %110 : vector<4x512xf32>
    %112 = vector.broadcast %93 : vector<4x1xf32> to vector<4x512xf32>
    %113 = arith.addf %111, %112 : vector<4x512xf32>
    %cst_51 = arith.constant 0.000000e+00 : f32
    %114 = vector.broadcast %cst_51 : f32 to vector<4x512xf32>
    %115 = arith.maximumf %113, %114 : vector<4x512xf32>
    %116 = vector.extract_strided_slice %115 {offsets = [0, 0], sizes = [4, 256], strides = [1, 1]} : vector<4x512xf32> to vector<4x256xf32>
    %c0_52 = arith.constant 0 : index
    %c0_53 = arith.constant 0 : index
    %c0_54 = arith.constant 0 : index
    %117 = vector.load %arg0[%c0_52, %c0_53, %c0_54] : memref<2x4x256xf32, #tpu.memory_space<vmem>>, vector<1x4x256xf32>
    %118 = vector.shape_cast %117 : vector<1x4x256xf32> to vector<4x256xf32>
    %119 = arith.addf %116, %118 : vector<4x256xf32>
    %c0_55 = arith.constant 0 : index
    %c0_56 = arith.constant 0 : index
    %c0_57 = arith.constant 0 : index
    %120 = vector.load %arg11[%c0_55, %c0_56, %c0_57] : memref<2x4x256xf32, #tpu.memory_space<vmem>>, vector<1x4x256xf32>
    %121 = vector.shape_cast %120 : vector<1x4x256xf32> to vector<4x256xf32>
    %122 = vector.shape_cast %119 : vector<4x256xf32> to vector<1x4x256xf32>
    tpu.vector_store %arg11[%c0_55, %c0_56, %c0_57], %122 {strides = array<i32>} : memref<2x4x256xf32, #tpu.memory_space<vmem>>, vector<1x4x256xf32>,
    %123 = vector.extract_strided_slice %115 {offsets = [0, 256], sizes = [4, 256], strides = [1, 1]} : vector<4x512xf32> to vector<4x256xf32>
    %c1_58 = arith.constant 1 : index
    %c0_59 = arith.constant 0 : index
    %c0_60 = arith.constant 0 : index
    %124 = vector.load %arg0[%c1_58, %c0_59, %c0_60] : memref<2x4x256xf32, #tpu.memory_space<vmem>>, vector<1x4x256xf32>
    %125 = vector.shape_cast %124 : vector<1x4x256xf32> to vector<4x256xf32>
    %126 = arith.addf %123, %125 : vector<4x256xf32>
    %c1_61 = arith.constant 1 : index
    %c0_62 = arith.constant 0 : index
    %c0_63 = arith.constant 0 : index
    %127 = vector.load %arg11[%c1_61, %c0_62, %c0_63] : memref<2x4x256xf32, #tpu.memory_space<vmem>>, vector<1x4x256xf32>
    %128 = vector.shape_cast %127 : vector<1x4x256xf32> to vector<4x256xf32>
    %129 = vector.shape_cast %126 : vector<4x256xf32> to vector<1x4x256xf32>
    tpu.vector_store %arg11[%c1_61, %c0_62, %c0_63], %129 {strides = array<i32>} : memref<2x4x256xf32, #tpu.memory_space<vmem>>, vector<1x4x256xf32>,
    return
  }
}

</mosaic_0001>

<llo_original>
// kernel: tpu_custom_call.1
$region0: #{tpu_custom_call.1}
  #allocation0 [shape = 'u32[]', space=smem, size = 0x4, offset = 0x4, fixed_abs, tag = 'smem constant byte address 0x4 - core index']
  #allocation1 [shape = 'u32[72,128]{1,0:T(1,128)}', space=vmem, size = 0x9000, scoped, tag = 'internal scratch']
  %s0 = inlined_call_operand.hbm [shape: f32[2,4,256], index: 0, kind: input, shape index: {}, may-alias: {0,11}]
  %s1 = inlined_call_operand.hbm [shape: f32[9,512], index: 1, kind: input, shape index: {}]
  %s2 = inlined_call_operand.vmem [shape: f32[8,4], index: 2, kind: input, shape index: {}]
  %s3 = inlined_call_operand.vmem [shape: f32[8,1], index: 3, kind: input, shape index: {}]
  %s4 = inlined_call_operand.vmem [shape: f32[8,1], index: 4, kind: input, shape index: {}]
  %s5 = inlined_call_operand.vmem [shape: f32[8,72], index: 5, kind: input, shape index: {}]
  %s6 = inlined_call_operand.vmem [shape: f32[8,1], index: 6, kind: input, shape index: {}]
  %s7 = inlined_call_operand.vmem [shape: f32[8,1], index: 7, kind: input, shape index: {}]
  %s8 = inlined_call_operand.vmem [shape: f32[4,8], index: 8, kind: input, shape index: {}]
  %s9 = inlined_call_operand.vmem [shape: f32[4,1], index: 9, kind: input, shape index: {}]
  %s10 = inlined_call_operand.vmem [shape: f32[4,1], index: 10, kind: input, shape index: {}]
  %s11 = inlined_call_operand.hbm [shape: f32[2,4,256], index: 11, kind: output, shape index: {}, may-alias: {0,11}]
  %s12 = sld [smem:[#allocation0]]
  $region62: #{tpu_custom_call.1} parent=0
    _
  %s14 = ssub.s32 1, %s12
  %s15 = scalar_select 0, %s14, %s12
  $region1: #{tpu_custom_call.1} parent=0
    #allocation2 [shape = 'u8[8192]{0}', space=vmem, size = 0x2000, scoped, tag = 'input window, operand 0, single buffered']
    #allocation3 [shape = 's32[1]{0}', space=sflag, size = 0x4, scoped, tag = 'scoped memory for tpu_custom_call.1']
    #allocation4 [shape = 's32[1]{0}', space=sflag, size = 0x4, scoped, tag = 'scoped memory for tpu_custom_call.1']
    #allocation5 [shape = 'u8[32768]{0}', space=vmem, size = 0x8000, scoped, tag = 'input window, operand 1, single buffered']
    #allocation6 [shape = 's32[1]{0}', space=sflag, size = 0x4, scoped, tag = 'scoped memory for tpu_custom_call.1']
    #allocation7 [shape = 'u8[8192]{0}', space=vmem, size = 0x2000, scoped, tag = 'output window, operand 0, single buffered']
    %16 = vsyncpa [#allocation3], 0
    %17 = vsyncpa [#allocation6], 0
    %18 = vsyncpa [#allocation4], 0
    // Predicated region
    $region2: #{tpu_custom_call.1} parent=1 // pred_check
      _
    $region3: #{tpu_custom_call.1} parent=1 // pred_check_branch
      %20 = sbr.rel (0) target = $region5
    $region4: #{tpu_custom_call.1} parent=1 // pred_region
      %22 = vsyncadd [#allocation3], 0
      %s23 = sshll.u32 %s0, 4
      %s24 = int_to_ptr.hbm [resolvable:$true] %s23
      %s25 = sshll.u32 [#allocation2], 4
      %s26 = int_to_ptr.vmem [resolvable:$true] %s25
      %31 = dma.hbm_to_vmem [thread:$0]  %s24, 256, %s26, [#allocation3], 128, 128, 8
    $region5: #{tpu_custom_call.1} parent=1 // pred_fallthru
      _
    // Predicated region
    $region6: #{tpu_custom_call.1} parent=1 // pred_check
      _
    $region7: #{tpu_custom_call.1} parent=1 // pred_check_branch
      %33 = sbr.rel (0) target = $region9
    $region8: #{tpu_custom_call.1} parent=1 // pred_region
      %35 = vsyncadd [#allocation6], 0
      %s36 = sshll.u32 %s1, 4
      %s37 = int_to_ptr.hbm [resolvable:$true] %s36
      %s38 = sshll.u32 [#allocation5], 4
      %s39 = int_to_ptr.vmem [resolvable:$true] %s38
      %44 = dma.hbm_to_vmem [thread:$0]  %s37, 1024, %s39, [#allocation6], 512, 512, 32
    $region9: #{tpu_custom_call.1} parent=1 // pred_fallthru
      _
    // Predicated region
    $region10: #{tpu_custom_call.1} parent=1 // pred_check
      _
    $region11: #{tpu_custom_call.1} parent=1 // pred_check_branch
      %46 = sbr.rel (0) target = $region13
    $region12: #{tpu_custom_call.1} parent=1 // pred_region
      _
    $region13: #{tpu_custom_call.1} parent=1 // pred_fallthru
      _
    // Predicated region
    $region14: #{tpu_custom_call.1} parent=1 // pred_check
      _
    $region15: #{tpu_custom_call.1} parent=1 // pred_check_branch
      %48 = sbr.rel (0) target = $region17
    $region16: #{tpu_custom_call.1} parent=1 // pred_region
      _
    $region17: #{tpu_custom_call.1} parent=1 // pred_fallthru
      _
    // Predicated region
    $region18: #{tpu_custom_call.1} parent=1 // pred_check
      _
    $region19: #{tpu_custom_call.1} parent=1 // pred_check_branch
      %50 = sbr.rel (0) target = $region21
    $region20: #{tpu_custom_call.1} parent=1 // pred_region
      _
    $region21: #{tpu_custom_call.1} parent=1 // pred_fallthru
      _
    // Predicated region
    $region22: #{tpu_custom_call.1} parent=1 // pred_check
      _
    $region23: #{tpu_custom_call.1} parent=1 // pred_check_branch
      %52 = sbr.rel (0) target = $region25
    $region24: #{tpu_custom_call.1} parent=1 // pred_region
      _
    $region25: #{tpu_custom_call.1} parent=1 // pred_fallthru
      _
    // Predicated region
    $region26: #{tpu_custom_call.1} parent=1 // pred_check
      _
    $region27: #{tpu_custom_call.1} parent=1 // pred_check_branch
      %54 = sbr.rel (0) target = $region29
    $region28: #{tpu_custom_call.1} parent=1 // pred_region
      _
    $region29: #{tpu_custom_call.1} parent=1 // pred_fallthru
      _
    // Predicated region
    $region30: #{tpu_custom_call.1} parent=1 // pred_check
      _
    $region31: #{tpu_custom_call.1} parent=1 // pred_check_branch
      %56 = sbr.rel (0) target = $region33
    $region32: #{tpu_custom_call.1} parent=1 // pred_region
      _
    $region33: #{tpu_custom_call.1} parent=1 // pred_fallthru
      _
    // Predicated region
    $region34: #{tpu_custom_call.1} parent=1 // pred_check
      _
    $region35: #{tpu_custom_call.1} parent=1 // pred_check_branch
      %58 = sbr.rel (0) target = $region37
    $region36: #{tpu_custom_call.1} parent=1 // pred_region
      _
    $region37: #{tpu_custom_call.1} parent=1 // pred_fallthru
      _
    // Predicated region
    $region38: #{tpu_custom_call.1} parent=1 // pred_check
      _
    $region39: #{tpu_custom_call.1} parent=1 // pred_check_branch
      %60 = sbr.rel (0) target = $region41
    $region40: #{tpu_custom_call.1} parent=1 // pred_region
      _
    $region41: #{tpu_custom_call.1} parent=1 // pred_fallthru
      _
    // Predicated region
    $region42: #{tpu_custom_call.1} parent=1 // pred_check
      _
    $region43: #{tpu_custom_call.1} parent=1 // pred_check_branch
      %62 = sbr.rel (0) target = $region45
    $region44: #{tpu_custom_call.1} parent=1 // pred_region
      _
    $region45: #{tpu_custom_call.1} parent=1 // pred_fallthru
      _
    // Predicated region
    $region46: #{tpu_custom_call.1} parent=1 // pred_check
      _
    $region47: #{tpu_custom_call.1} parent=1 // pred_check_branch
      %64 = sbr.rel (0) target = $region49
    $region48: #{tpu_custom_call.1} parent=1 // pred_region
      %66 = dma.done [#allocation3], 256
    $region49: #{tpu_custom_call.1} parent=1 // pred_fallthru
      _
    // Predicated region
    $region50: #{tpu_custom_call.1} parent=1 // pred_check
      _
    $region51: #{tpu_custom_call.1} parent=1 // pred_check_branch
      %68 = sbr.rel (0) target = $region53
    $region52: #{tpu_custom_call.1} parent=1 // pred_region
      %70 = dma.done [#allocation6], 1024
    $region53: #{tpu_custom_call.1} parent=1 // pred_fallthru
      _
    %v71 = vld [vmem:[#allocation2] sm:$0xff]
    %s72 = scalar_lea.vmem [#allocation2], 8
    %v73 = vld [vmem:[%s72] sm:$0xff]
    %75 = vst [vmem:[#allocation1] ss:$2 sm:$0xff] %v71
    %v76 = vld.sshfl [vmem:[#allocation1] sm:$0xff pattern:$0x75316420]
    %v77 = vld.sshfl [vmem:[#allocation1 + $0x8] sm:$0xff pattern:$0x75316420]
    %79 = vst [vmem:[#allocation1] ss:$2 sm:$0xff] %v73
    %v80 = vld.sshfl [vmem:[#allocation1] sm:$0xff pattern:$0x75316420]
    %v81 = vld.sshfl [vmem:[#allocation1 + $0x8] sm:$0xff pattern:$0x75316420]
    %v82 = vld [vmem:[%s2] sm:$0xff]
    %vm83 = vcmask 31744
    %v85 = vsel %vm83, %v82, 0
    %vm87 = vcmask 1043456
    %v88 = vsel %vm87, %v76, 0
    %v90 = vsel %vm87, %v77, 0
    %v92 = vsel %vm87, %v80, 0
    %v94 = vsel %vm87, %v81, 0
    %96 = vmatpush.msra.mxu0 0.0
    %97 = vmatpush.msra.mxu0 0.0
    %98 = vmatpush.msra.mxu0 0.0
    %99 = vmatpush.msra.mxu0 0.0
    %100 = vmatpush.msra.mxu0 0.0
    %101 = vmatpush.msra.mxu0 0.0
    %102 = vmatpush.msra.mxu0 0.0
    %103 = vmatpush.msra.mxu0 0.0
    %104 = vmatpush.msra.mxu0 0.0
    %105 = vmatpush.msra.mxu0 0.0
    %106 = vmatpush.msra.mxu0 0.0
    %107 = vmatpush.msra.mxu0 0.0
    %108 = vmatpush.msra.mxu0 0.0
    %109 = vmatpush.msra.mxu0 0.0
    %110 = vmatpush.msra.mxu0 0.0
    %v111 = vand.u32 %v88, 4294901760
    %112 = vmatpush.msra.mxu0 %v111
    %v113 = vand.u32 %v85, 4294901760
    %v114 = vsub.f32 %v85, %v113
    %v115 = vand.u32 %v114, 4294901760
    %v116 = vsub.f32 %v114, %v115
    %v117 = vand.u32 %v116, 4294901760
    %118 = vmatmul.f32.gmra.mxu0 %v117
    %v119 = vpop.f32.mrf.mxu0
    %v120 = vadd.f32 0.0, %v119
    %121 = vdwg.mxu0
    %122 = vmatpush.msra.mxu0 0.0
    %123 = vmatpush.msra.mxu0 0.0
    %124 = vmatpush.msra.mxu0 0.0
    %125 = vmatpush.msra.mxu0 0.0
    %126 = vmatpush.msra.mxu0 0.0
    %127 = vmatpush.msra.mxu0 0.0
    %128 = vmatpush.msra.mxu0 0.0
    %129 = vmatpush.msra.mxu0 0.0
    %130 = vmatpush.msra.mxu0 0.0
    %131 = vmatpush.msra.mxu0 0.0
    %132 = vmatpush.msra.mxu0 0.0
    %133 = vmatpush.msra.mxu0 0.0
    %134 = vmatpush.msra.mxu0 0.0
    %135 = vmatpush.msra.mxu0 0.0
    %136 = vmatpush.msra.mxu0 0.0
    %v137 = vand.u32 %v88, 4294901760
    %v138 = vsub.f32 %v88, %v137
    %v139 = vand.u32 %v138, 4294901760
    %v140 = vsub.f32 %v138, %v139
    %v141 = vand.u32 %v140, 4294901760
    %142 = vmatpush.msra.mxu0 %v141
    %v143 = vand.u32 %v85, 4294901760
    %144 = vmatmul.f32.gmra.mxu0 %v143
    %v145 = vpop.f32.mrf.mxu0
    %v146 = vadd.f32 %v120, %v145
    %147 = vdwg.mxu0
    %148 = vmatpush.msra.mxu0 0.0
    %149 = vmatpush.msra.mxu0 0.0
    %150 = vmatpush.msra.mxu0 0.0
    %151 = vmatpush.msra.mxu0 0.0
    %152 = vmatpush.msra.mxu0 0.0
    %153 = vmatpush.msra.mxu0 0.0
    %154 = vmatpush.msra.mxu0 0.0
    %155 = vmatpush.msra.mxu0 0.0
    %156 = vmatpush.msra.mxu0 0.0
    %157 = vmatpush.msra.mxu0 0.0
    %158 = vmatpush.msra.mxu0 0.0
    %159 = vmatpush.msra.mxu0 0.0
    %160 = vmatpush.msra.mxu0 0.0
    %161 = vmatpush.msra.mxu0 0.0
    %162 = vmatpush.msra.mxu0 0.0
    %v163 = vand.u32 %v88, 4294901760
    %v164 = vsub.f32 %v88, %v163
    %165 = vmatpush.msra.mxu0 %v164
    %v166 = vand.u32 %v85, 4294901760
    %v167 = vsub.f32 %v85, %v166
    %168 = vmatmul.f32.gmra.mxu0 %v167
    %v169 = vpop.f32.mrf.mxu0
    %v170 = vadd.f32 %v146, %v169
    %171 = vdwg.mxu0
    %172 = vmatpush.msra.mxu0 0.0
    %173 = vmatpush.msra.mxu0 0.0
    %174 = vmatpush.msra.mxu0 0.0
    %175 = vmatpush.msra.mxu0 0.0
    %176 = vmatpush.msra.mxu0 0.0
    %177 = vmatpush.msra.mxu0 0.0
    %178 = vmatpush.msra.mxu0 0.0
    %179 = vmatpush.msra.mxu0 0.0
    %180 = vmatpush.msra.mxu0 0.0
    %181 = vmatpush.msra.mxu0 0.0
    %182 = vmatpush.msra.mxu0 0.0
    %183 = vmatpush.msra.mxu0 0.0
    %184 = vmatpush.msra.mxu0 0.0
    %185 = vmatpush.msra.mxu0 0.0
    %186 = vmatpush.msra.mxu0 0.0
    %v187 = vand.u32 %v88, 4294901760
    %188 = vmatpush.msra.mxu0 %v187
    %v189 = vand.u32 %v85, 4294901760
    %v190 = vsub.f32 %v85, %v189
    %v191 = vand.u32 %v190, 4294901760
    %192 = vmatmul.f32.gmra.mxu0 %v191
    %v193 = vpop.f32.mrf.mxu0
    %v194 = vadd.f32 %v170, %v193
    %195 = vdwg.mxu0
    %196 = vmatpush.msra.mxu0 0.0
    %197 = vmatpush.msra.mxu0 0.0
    %198 = vmatpush.msra.mxu0 0.0
    %199 = vmatpush.msra.mxu0 0.0
    %200 = vmatpush.msra.mxu0 0.0
    %201 = vmatpush.msra.mxu0 0.0
    %202 = vmatpush.msra.mxu0 0.0
    %203 = vmatpush.msra.mxu0 0.0
    %204 = vmatpush.msra.mxu0 0.0
    %205 = vmatpush.msra.mxu0 0.0
    %206 = vmatpush.msra.mxu0 0.0
    %207 = vmatpush.msra.mxu0 0.0
    %208 = vmatpush.msra.mxu0 0.0
    %209 = vmatpush.msra.mxu0 0.0
    %210 = vmatpush.msra.mxu0 0.0
    %v211 = vand.u32 %v88, 4294901760
    %v212 = vsub.f32 %v88, %v211
    %v213 = vand.u32 %v212, 4294901760
    %214 = vmatpush.msra.mxu0 %v213
    %v215 = vand.u32 %v85, 4294901760
    %216 = vmatmul.f32.gmra.mxu0 %v215
    %v217 = vpop.f32.mrf.mxu0
    %v218 = vadd.f32 %v194, %v217
    %219 = vdwg.mxu0
    %220 = vmatpush.msra.mxu0 0.0
    %221 = vmatpush.msra.mxu0 0.0
    %222 = vmatpush.msra.mxu0 0.0
    %223 = vmatpush.msra.mxu0 0.0
    %224 = vmatpush.msra.mxu0 0.0
    %225 = vmatpush.msra.mxu0 0.0
    %226 = vmatpush.msra.mxu0 0.0
    %227 = vmatpush.msra.mxu0 0.0
    %228 = vmatpush.msra.mxu0 0.0
    %229 = vmatpush.msra.mxu0 0.0
    %230 = vmatpush.msra.mxu0 0.0
    %231 = vmatpush.msra.mxu0 0.0
    %232 = vmatpush.msra.mxu0 0.0
    %233 = vmatpush.msra.mxu0 0.0
    %234 = vmatpush.msra.mxu0 0.0
    %v235 = vand.u32 %v88, 4294901760
    %236 = vmatpush.msra.mxu0 %v235
    %v237 = vand.u32 %v85, 4294901760
    %238 = vmatmul.f32.gmra.mxu0 %v237
    %v239 = vpop.f32.mrf.mxu0
    %v240 = vadd.f32 %v218, %v239
    %241 = vdwg.mxu0
    %242 = vmatpush.msra.mxu0 0.0
    %243 = vmatpush.msra.mxu0 0.0
    %244 = vmatpush.msra.mxu0 0.0
    %245 = vmatpush.msra.mxu0 0.0
    %246 = vmatpush.msra.mxu0 0.0
    %247 = vmatpush.msra.mxu0 0.0
    %248 = vmatpush.msra.mxu0 0.0
    %249 = vmatpush.msra.mxu0 0.0
    %250 = vmatpush.msra.mxu0 0.0
    %251 = vmatpush.msra.mxu0 0.0
    %252 = vmatpush.msra.mxu0 0.0
    %253 = vmatpush.msra.mxu0 0.0
    %254 = vmatpush.msra.mxu0 0.0
    %255 = vmatpush.msra.mxu0 0.0
    %256 = vmatpush.msra.mxu0 0.0
    %v257 = vand.u32 %v90, 4294901760
    %258 = vmatpush.msra.mxu0 %v257
    %v259 = vand.u32 %v85, 4294901760
    %v260 = vsub.f32 %v85, %v259
    %v261 = vand.u32 %v260, 4294901760
    %v262 = vsub.f32 %v260, %v261
    %v263 = vand.u32 %v262, 4294901760
    %264 = vmatmul.f32.gmra.mxu0 %v263
    %v265 = vpop.f32.mrf.mxu0
    %v266 = vadd.f32 0.0, %v265
    %267 = vdwg.mxu0
    %268 = vmatpush.msra.mxu0 0.0
    %269 = vmatpush.msra.mxu0 0.0
    %270 = vmatpush.msra.mxu0 0.0
    %271 = vmatpush.msra.mxu0 0.0
    %272 = vmatpush.msra.mxu0 0.0
    %273 = vmatpush.msra.mxu0 0.0
    %274 = vmatpush.msra.mxu0 0.0
    %275 = vmatpush.msra.mxu0 0.0
    %276 = vmatpush.msra.mxu0 0.0
    %277 = vmatpush.msra.mxu0 0.0
    %278 = vmatpush.msra.mxu0 0.0
    %279 = vmatpush.msra.mxu0 0.0
    %280 = vmatpush.msra.mxu0 0.0
    %281 = vmatpush.msra.mxu0 0.0
    %282 = vmatpush.msra.mxu0 0.0
    %v283 = vand.u32 %v90, 4294901760
    %v284 = vsub.f32 %v90, %v283
    %v285 = vand.u32 %v284, 4294901760
    %v286 = vsub.f32 %v284, %v285
    %v287 = vand.u32 %v286, 4294901760
    %288 = vmatpush.msra.mxu0 %v287
    %v289 = vand.u32 %v85, 4294901760
    %290 = vmatmul.f32.gmra.mxu0 %v289
    %v291 = vpop.f32.mrf.mxu0
    %v292 = vadd.f32 %v266, %v291
    %293 = vdwg.mxu0
    %294 = vmatpush.msra.mxu0 0.0
    %295 = vmatpush.msra.mxu0 0.0
    %296 = vmatpush.msra.mxu0 0.0
    %297 = vmatpush.msra.mxu0 0.0
    %298 = vmatpush.msra.mxu0 0.0
    %299 = vmatpush.msra.mxu0 0.0
    %300 = vmatpush.msra.mxu0 0.0
    %301 = vmatpush.msra.mxu0 0.0
    %302 = vmatpush.msra.mxu0 0.0
    %303 = vmatpush.msra.mxu0 0.0
    %304 = vmatpush.msra.mxu0 0.0
    %305 = vmatpush.msra.mxu0 0.0
    %306 = vmatpush.msra.mxu0 0.0
    %307 = vmatpush.msra.mxu0 0.0
    %308 = vmatpush.msra.mxu0 0.0
    %v309 = vand.u32 %v90, 4294901760
    %v310 = vsub.f32 %v90, %v309
    %311 = vmatpush.msra.mxu0 %v310
    %v312 = vand.u32 %v85, 4294901760
    %v313 = vsub.f32 %v85, %v312
    %314 = vmatmul.f32.gmra.mxu0 %v313
    %v315 = vpop.f32.mrf.mxu0
    %v316 = vadd.f32 %v292, %v315
    %317 = vdwg.mxu0
    %318 = vmatpush.msra.mxu0 0.0
    %319 = vmatpush.msra.mxu0 0.0
    %320 = vmatpush.msra.mxu0 0.0
    %321 = vmatpush.msra.mxu0 0.0
    %322 = vmatpush.msra.mxu0 0.0
    %323 = vmatpush.msra.mxu0 0.0
    %324 = vmatpush.msra.mxu0 0.0
    %325 = vmatpush.msra.mxu0 0.0
    %326 = vmatpush.msra.mxu0 0.0
    %327 = vmatpush.msra.mxu0 0.0
    %328 = vmatpush.msra.mxu0 0.0
    %329 = vmatpush.msra.mxu0 0.0
    %330 = vmatpush.msra.mxu0 0.0
    %331 = vmatpush.msra.mxu0 0.0
    %332 = vmatpush.msra.mxu0 0.0
    %v333 = vand.u32 %v90, 4294901760
    %334 = vmatpush.msra.mxu0 %v333
    %v335 = vand.u32 %v85, 4294901760
    %v336 = vsub.f32 %v85, %v335
    %v337 = vand.u32 %v336, 4294901760
    %338 = vmatmul.f32.gmra.mxu0 %v337
    %v339 = vpop.f32.mrf.mxu0
    %v340 = vadd.f32 %v316, %v339
    %341 = vdwg.mxu0
    %342 = vmatpush.msra.mxu0 0.0
    %343 = vmatpush.msra.mxu0 0.0
    %344 = vmatpush.msra.mxu0 0.0
    %345 = vmatpush.msra.mxu0 0.0
    %346 = vmatpush.msra.mxu0 0.0
    %347 = vmatpush.msra.mxu0 0.0
    %348 = vmatpush.msra.mxu0 0.0
    %349 = vmatpush.msra.mxu0 0.0
    %350 = vmatpush.msra.mxu0 0.0
    %351 = vmatpush.msra.mxu0 0.0
    %352 = vmatpush.msra.mxu0 0.0
    %353 = vmatpush.msra.mxu0 0.0
    %354 = vmatpush.msra.mxu0 0.0
    %355 = vmatpush.msra.mxu0 0.0
    %356 = vmatpush.msra.mxu0 0.0
    %v357 = vand.u32 %v90, 4294901760
    %v358 = vsub.f32 %v90, %v357
    %v359 = vand.u32 %v358, 4294901760
    %360 = vmatpush.msra.mxu0 %v359
    %v361 = vand.u32 %v85, 4294901760
    %362 = vmatmul.f32.gmra.mxu0 %v361
    %v363 = vpop.f32.mrf.mxu0
    %v364 = vadd.f32 %v340, %v363
    %365 = vdwg.mxu0
    %366 = vmatpush.msra.mxu0 0.0
    %367 = vmatpush.msra.mxu0 0.0
    %368 = vmatpush.msra.mxu0 0.0
    %369 = vmatpush.msra.mxu0 0.0
    %370 = vmatpush.msra.mxu0 0.0
    %371 = vmatpush.msra.mxu0 0.0
    %372 = vmatpush.msra.mxu0 0.0
    %373 = vmatpush.msra.mxu0 0.0
    %374 = vmatpush.msra.mxu0 0.0
    %375 = vmatpush.msra.mxu0 0.0
    %376 = vmatpush.msra.mxu0 0.0
    %377 = vmatpush.msra.mxu0 0.0
    %378 = vmatpush.msra.mxu0 0.0
    %379 = vmatpush.msra.mxu0 0.0
    %380 = vmatpush.msra.mxu0 0.0
    %v381 = vand.u32 %v90, 4294901760
    %382 = vmatpush.msra.mxu0 %v381
    %v383 = vand.u32 %v85, 4294901760
    %384 = vmatmul.f32.gmra.mxu0 %v383
    %v385 = vpop.f32.mrf.mxu0
    %v386 = vadd.f32 %v364, %v385
    %387 = vdwg.mxu0
    %388 = vmatpush.msra.mxu0 0.0
    %389 = vmatpush.msra.mxu0 0.0
    %390 = vmatpush.msra.mxu0 0.0
    %391 = vmatpush.msra.mxu0 0.0
    %392 = vmatpush.msra.mxu0 0.0
    %393 = vmatpush.msra.mxu0 0.0
    %394 = vmatpush.msra.mxu0 0.0
    %395 = vmatpush.msra.mxu0 0.0
    %396 = vmatpush.msra.mxu0 0.0
    %397 = vmatpush.msra.mxu0 0.0
    %398 = vmatpush.msra.mxu0 0.0
    %399 = vmatpush.msra.mxu0 0.0
    %400 = vmatpush.msra.mxu0 0.0
    %401 = vmatpush.msra.mxu0 0.0
    %402 = vmatpush.msra.mxu0 0.0
    %v403 = vand.u32 %v92, 4294901760
    %404 = vmatpush.msra.mxu0 %v403
    %v405 = vand.u32 %v85, 4294901760
    %v406 = vsub.f32 %v85, %v405
    %v407 = vand.u32 %v406, 4294901760
    %v408 = vsub.f32 %v406, %v407
    %v409 = vand.u32 %v408, 4294901760
    %410 = vmatmul.f32.gmra.mxu0 %v409
    %v411 = vpop.f32.mrf.mxu0
    %v412 = vadd.f32 0.0, %v411
    %413 = vdwg.mxu0
    %414 = vmatpush.msra.mxu0 0.0
    %415 = vmatpush.msra.mxu0 0.0
    %416 = vmatpush.msra.mxu0 0.0
    %417 = vmatpush.msra.mxu0 0.0
    %418 = vmatpush.msra.mxu0 0.0
    %419 = vmatpush.msra.mxu0 0.0
    %420 = vmatpush.msra.mxu0 0.0
    %421 = vmatpush.msra.mxu0 0.0
    %422 = vmatpush.msra.mxu0 0.0
    %423 = vmatpush.msra.mxu0 0.0
    %424 = vmatpush.msra.mxu0 0.0
    %425 = vmatpush.msra.mxu0 0.0
    %426 = vmatpush.msra.mxu0 0.0
    %427 = vmatpush.msra.mxu0 0.0
    %428 = vmatpush.msra.mxu0 0.0
    %v429 = vand.u32 %v92, 4294901760
    %v430 = vsub.f32 %v92, %v429
    %v431 = vand.u32 %v430, 4294901760
    %v432 = vsub.f32 %v430, %v431
    %v433 = vand.u32 %v432, 4294901760
    %434 = vmatpush.msra.mxu0 %v433
    %v435 = vand.u32 %v85, 4294901760
    %436 = vmatmul.f32.gmra.mxu0 %v435
    %v437 = vpop.f32.mrf.mxu0
    %v438 = vadd.f32 %v412, %v437
    %439 = vdwg.mxu0
    %440 = vmatpush.msra.mxu0 0.0
    %441 = vmatpush.msra.mxu0 0.0
    %442 = vmatpush.msra.mxu0 0.0
    %443 = vmatpush.msra.mxu0 0.0
    %444 = vmatpush.msra.mxu0 0.0
    %445 = vmatpush.msra.mxu0 0.0
    %446 = vmatpush.msra.mxu0 0.0
    %447 = vmatpush.msra.mxu0 0.0
    %448 = vmatpush.msra.mxu0 0.0
    %449 = vmatpush.msra.mxu0 0.0
    %450 = vmatpush.msra.mxu0 0.0
    %451 = vmatpush.msra.mxu0 0.0
    %452 = vmatpush.msra.mxu0 0.0
    %453 = vmatpush.msra.mxu0 0.0
    %454 = vmatpush.msra.mxu0 0.0
    %v455 = vand.u32 %v92, 4294901760
    %v456 = vsub.f32 %v92, %v455
    %457 = vmatpush.msra.mxu0 %v456
    %v458 = vand.u32 %v85, 4294901760
    %v459 = vsub.f32 %v85, %v458
    %460 = vmatmul.f32.gmra.mxu0 %v459
    %v461 = vpop.f32.mrf.mxu0
    %v462 = vadd.f32 %v438, %v461
    %463 = vdwg.mxu0
    %464 = vmatpush.msra.mxu0 0.0
    %465 = vmatpush.msra.mxu0 0.0
    %466 = vmatpush.msra.mxu0 0.0
    %467 = vmatpush.msra.mxu0 0.0
    %468 = vmatpush.msra.mxu0 0.0
    %469 = vmatpush.msra.mxu0 0.0
    %470 = vmatpush.msra.mxu0 0.0
    %471 = vmatpush.msra.mxu0 0.0
    %472 = vmatpush.msra.mxu0 0.0
    %473 = vmatpush.msra.mxu0 0.0
    %474 = vmatpush.msra.mxu0 0.0
    %475 = vmatpush.msra.mxu0 0.0
    %476 = vmatpush.msra.mxu0 0.0
    %477 = vmatpush.msra.mxu0 0.0
    %478 = vmatpush.msra.mxu0 0.0
    %v479 = vand.u32 %v92, 4294901760
    %480 = vmatpush.msra.mxu0 %v479
    %v481 = vand.u32 %v85, 4294901760
    %v482 = vsub.f32 %v85, %v481
    %v483 = vand.u32 %v482, 4294901760
    %484 = vmatmul.f32.gmra.mxu0 %v483
    %v485 = vpop.f32.mrf.mxu0
    %v486 = vadd.f32 %v462, %v485
    %487 = vdwg.mxu0
    %488 = vmatpush.msra.mxu0 0.0
    %489 = vmatpush.msra.mxu0 0.0
    %490 = vmatpush.msra.mxu0 0.0
    %491 = vmatpush.msra.mxu0 0.0
    %492 = vmatpush.msra.mxu0 0.0
    %493 = vmatpush.msra.mxu0 0.0
    %494 = vmatpush.msra.mxu0 0.0
    %495 = vmatpush.msra.mxu0 0.0
    %496 = vmatpush.msra.mxu0 0.0
    %497 = vmatpush.msra.mxu0 0.0
    %498 = vmatpush.msra.mxu0 0.0
    %499 = vmatpush.msra.mxu0 0.0
    %500 = vmatpush.msra.mxu0 0.0
    %501 = vmatpush.msra.mxu0 0.0
    %502 = vmatpush.msra.mxu0 0.0
    %v503 = vand.u32 %v92, 4294901760
    %v504 = vsub.f32 %v92, %v503
    %v505 = vand.u32 %v504, 4294901760
    %506 = vmatpush.msra.mxu0 %v505
    %v507 = vand.u32 %v85, 4294901760
    %508 = vmatmul.f32.gmra.mxu0 %v507
    %v509 = vpop.f32.mrf.mxu0
    %v510 = vadd.f32 %v486, %v509
    %511 = vdwg.mxu0
    %512 = vmatpush.msra.mxu0 0.0
    %513 = vmatpush.msra.mxu0 0.0
    %514 = vmatpush.msra.mxu0 0.0
    %515 = vmatpush.msra.mxu0 0.0
    %516 = vmatpush.msra.mxu0 0.0
    %517 = vmatpush.msra.mxu0 0.0
    %518 = vmatpush.msra.mxu0 0.0
    %519 = vmatpush.msra.mxu0 0.0
    %520 = vmatpush.msra.mxu0 0.0
    %521 = vmatpush.msra.mxu0 0.0
    %522 = vmatpush.msra.mxu0 0.0
    %523 = vmatpush.msra.mxu0 0.0
    %524 = vmatpush.msra.mxu0 0.0
    %525 = vmatpush.msra.mxu0 0.0
    %526 = vmatpush.msra.mxu0 0.0
    %v527 = vand.u32 %v92, 4294901760
    %528 = vmatpush.msra.mxu0 %v527
    %v529 = vand.u32 %v85, 4294901760
    %530 = vmatmul.f32.gmra.mxu0 %v529
    %v531 = vpop.f32.mrf.mxu0
    %v532 = vadd.f32 %v510, %v531
    %533 = vdwg.mxu0
    %534 = vmatpush.msra.mxu0 0.0
    %535 = vmatpush.msra.mxu0 0.0
    %536 = vmatpush.msra.mxu0 0.0
    %537 = vmatpush.msra.mxu0 0.0
    %538 = vmatpush.msra.mxu0 0.0
    %539 = vmatpush.msra.mxu0 0.0
    %540 = vmatpush.msra.mxu0 0.0
    %541 = vmatpush.msra.mxu0 0.0
    %542 = vmatpush.msra.mxu0 0.0
    %543 = vmatpush.msra.mxu0 0.0
    %544 = vmatpush.msra.mxu0 0.0
    %545 = vmatpush.msra.mxu0 0.0
    %546 = vmatpush.msra.mxu0 0.0
    %547 = vmatpush.msra.mxu0 0.0
    %548 = vmatpush.msra.mxu0 0.0
    %v549 = vand.u32 %v94, 4294901760
    %550 = vmatpush.msra.mxu0 %v549
    %v551 = vand.u32 %v85, 4294901760
    %v552 = vsub.f32 %v85, %v551
    %v553 = vand.u32 %v552, 4294901760
    %v554 = vsub.f32 %v552, %v553
    %v555 = vand.u32 %v554, 4294901760
    %556 = vmatmul.f32.gmra.mxu0 %v555
    %v557 = vpop.f32.mrf.mxu0
    %v558 = vadd.f32 0.0, %v557
    %559 = vdwg.mxu0
    %560 = vmatpush.msra.mxu0 0.0
    %561 = vmatpush.msra.mxu0 0.0
    %562 = vmatpush.msra.mxu0 0.0
    %563 = vmatpush.msra.mxu0 0.0
    %564 = vmatpush.msra.mxu0 0.0
    %565 = vmatpush.msra.mxu0 0.0
    %566 = vmatpush.msra.mxu0 0.0
    %567 = vmatpush.msra.mxu0 0.0
    %568 = vmatpush.msra.mxu0 0.0
    %569 = vmatpush.msra.mxu0 0.0
    %570 = vmatpush.msra.mxu0 0.0
    %571 = vmatpush.msra.mxu0 0.0
    %572 = vmatpush.msra.mxu0 0.0
    %573 = vmatpush.msra.mxu0 0.0
    %574 = vmatpush.msra.mxu0 0.0
    %v575 = vand.u32 %v94, 4294901760
    %v576 = vsub.f32 %v94, %v575
    %v577 = vand.u32 %v576, 4294901760
    %v578 = vsub.f32 %v576, %v577
    %v579 = vand.u32 %v578, 4294901760
    %580 = vmatpush.msra.mxu0 %v579
    %v581 = vand.u32 %v85, 4294901760
    %582 = vmatmul.f32.gmra.mxu0 %v581
    %v583 = vpop.f32.mrf.mxu0
    %v584 = vadd.f32 %v558, %v583
    %585 = vdwg.mxu0
    %586 = vmatpush.msra.mxu0 0.0
    %587 = vmatpush.msra.mxu0 0.0
    %588 = vmatpush.msra.mxu0 0.0
    %589 = vmatpush.msra.mxu0 0.0
    %590 = vmatpush.msra.mxu0 0.0
    %591 = vmatpush.msra.mxu0 0.0
    %592 = vmatpush.msra.mxu0 0.0
    %593 = vmatpush.msra.mxu0 0.0
    %594 = vmatpush.msra.mxu0 0.0
    %595 = vmatpush.msra.mxu0 0.0
    %596 = vmatpush.msra.mxu0 0.0
    %597 = vmatpush.msra.mxu0 0.0
    %598 = vmatpush.msra.mxu0 0.0
    %599 = vmatpush.msra.mxu0 0.0
    %600 = vmatpush.msra.mxu0 0.0
    %v601 = vand.u32 %v94, 4294901760
    %v602 = vsub.f32 %v94, %v601
    %603 = vmatpush.msra.mxu0 %v602
    %v604 = vand.u32 %v85, 4294901760
    %v605 = vsub.f32 %v85, %v604
    %606 = vmatmul.f32.gmra.mxu0 %v605
    %v607 = vpop.f32.mrf.mxu0
    %v608 = vadd.f32 %v584, %v607
    %609 = vdwg.mxu0
    %610 = vmatpush.msra.mxu0 0.0
    %611 = vmatpush.msra.mxu0 0.0
    %612 = vmatpush.msra.mxu0 0.0
    %613 = vmatpush.msra.mxu0 0.0
    %614 = vmatpush.msra.mxu0 0.0
    %615 = vmatpush.msra.mxu0 0.0
    %616 = vmatpush.msra.mxu0 0.0
    %617 = vmatpush.msra.mxu0 0.0
    %618 = vmatpush.msra.mxu0 0.0
    %619 = vmatpush.msra.mxu0 0.0
    %620 = vmatpush.msra.mxu0 0.0
    %621 = vmatpush.msra.mxu0 0.0
    %622 = vmatpush.msra.mxu0 0.0
    %623 = vmatpush.msra.mxu0 0.0
    %624 = vmatpush.msra.mxu0 0.0
    %v625 = vand.u32 %v94, 4294901760
    %626 = vmatpush.msra.mxu0 %v625
    %v627 = vand.u32 %v85, 4294901760
    %v628 = vsub.f32 %v85, %v627
    %v629 = vand.u32 %v628, 4294901760
    %630 = vmatmul.f32.gmra.mxu0 %v629
    %v631 = vpop.f32.mrf.mxu0
    %v632 = vadd.f32 %v608, %v631
    %633 = vdwg.mxu0
    %634 = vmatpush.msra.mxu0 0.0
    %635 = vmatpush.msra.mxu0 0.0
    %636 = vmatpush.msra.mxu0 0.0
    %637 = vmatpush.msra.mxu0 0.0
    %638 = vmatpush.msra.mxu0 0.0
    %639 = vmatpush.msra.mxu0 0.0
    %640 = vmatpush.msra.mxu0 0.0
    %641 = vmatpush.msra.mxu0 0.0
    %642 = vmatpush.msra.mxu0 0.0
    %643 = vmatpush.msra.mxu0 0.0
    %644 = vmatpush.msra.mxu0 0.0
    %645 = vmatpush.msra.mxu0 0.0
    %646 = vmatpush.msra.mxu0 0.0
    %647 = vmatpush.msra.mxu0 0.0
    %648 = vmatpush.msra.mxu0 0.0
    %v649 = vand.u32 %v94, 4294901760
    %v650 = vsub.f32 %v94, %v649
    %v651 = vand.u32 %v650, 4294901760
    %652 = vmatpush.msra.mxu0 %v651
    %v653 = vand.u32 %v85, 4294901760
    %654 = vmatmul.f32.gmra.mxu0 %v653
    %v655 = vpop.f32.mrf.mxu0
    %v656 = vadd.f32 %v632, %v655
    %657 = vdwg.mxu0
    %658 = vmatpush.msra.mxu0 0.0
    %659 = vmatpush.msra.mxu0 0.0
    %660 = vmatpush.msra.mxu0 0.0
    %661 = vmatpush.msra.mxu0 0.0
    %662 = vmatpush.msra.mxu0 0.0
    %663 = vmatpush.msra.mxu0 0.0
    %664 = vmatpush.msra.mxu0 0.0
    %665 = vmatpush.msra.mxu0 0.0
    %666 = vmatpush.msra.mxu0 0.0
    %667 = vmatpush.msra.mxu0 0.0
    %668 = vmatpush.msra.mxu0 0.0
    %669 = vmatpush.msra.mxu0 0.0
    %670 = vmatpush.msra.mxu0 0.0
    %671 = vmatpush.msra.mxu0 0.0
    %672 = vmatpush.msra.mxu0 0.0
    %v673 = vand.u32 %v94, 4294901760
    %674 = vmatpush.msra.mxu0 %v673
    %v675 = vand.u32 %v85, 4294901760
    %676 = vmatmul.f32.gmra.mxu0 %v675
    %v677 = vpop.f32.mrf.mxu0
    %v678 = vadd.f32 %v656, %v677
    %679 = vdwg.mxu0
    %v680 = vld [vmem:[%s3] sm:$0xff]
    %v681 = vld [vmem:[%s4] sm:$0xff]
    %v682 = vadd.f32 %v240, %v386
    %v683 = vadd.f32 %v682, %v532
    %v684 = vadd.f32 %v683, %v678
    %685 = vadd.xlane.f32.xlu0 %v684
    %v686 = vpop.xlane.xlu0 %685
    %v687 = vmul.f32 %v686, 0.001953125
    %v688 = vsub.f32 %v240, %v687
    %v689 = vsub.f32 %v386, %v687
    %v690 = vsub.f32 %v532, %v687
    %v691 = vsub.f32 %v678, %v687
    %v692 = vmul.f32 %v688, %v688
    %v693 = vmul.f32 %v689, %v689
    %v694 = vmul.f32 %v690, %v690
    %v695 = vmul.f32 %v691, %v691
    %v696 = vadd.f32 %v692, %v693
    %v697 = vadd.f32 %v696, %v694
    %v698 = vadd.f32 %v697, %v695
    %699 = vadd.xlane.f32.xlu0 %v698
    %v700 = vpop.xlane.xlu0 %699
    %v701 = vmul.f32 %v700, 0.001953125
    %v702 = vadd.f32 %v701, 1e-05
    %v703 = vrsqrt.pop %v702
    %v704 = vmul.f32 %v703, %v702
    %v705 = vmul.f32 %v704, %v703
    %v706 = vmul.f32 0.5, %v705
    %v707 = vsub.f32 1.5, %v706
    %v708 = vmul.f32 %v703, %v707
    %vm709 = vweird.f32 %v702
    %vm710 = vweird.f32 %v703
    %vm711 = vmor %vm709, %vm710
    %v712 = vsel %vm711, %v703, %v708
    %v713 = vmul.f32 %v688, %v712
    %v714 = vmul.f32 %v689, %v712
    %v715 = vmul.f32 %v690, %v712
    %v716 = vmul.f32 %v691, %v712
    %718 = vset.pattern.permute.xlu0 0
    %719 = vperm.xlu0 %718, %v680
    %v720 = vpop.permute.xlu0 %719
    %v722 = vmul.f32 %v713, %v720
    %v723 = vmul.f32 %v714, %v720
    %v724 = vmul.f32 %v715, %v720
    %v725 = vmul.f32 %v716, %v720
    %727 = vset.pattern.permute.xlu0 0
    %728 = vperm.xlu0 %727, %v681
    %v729 = vpop.permute.xlu0 %728
    %v731 = vadd.f32 %v722, %v729
    %v732 = vadd.f32 %v723, %v729
    %v733 = vadd.f32 %v724, %v729
    %v734 = vadd.f32 %v725, %v729
    %v735 = vmax.f32 %v731, 0.0
    %v736 = vmax.f32 %v732, 0.0
    %v737 = vmax.f32 %v733, 0.0
    %v738 = vmax.f32 %v734, 0.0
    %739 = vrot.lane.b32.xlu0 %v735, 17
    %v740 = vpop.permute.xlu0 %739
    %741 = vrot.lane.b32.xlu0 %v736, 17
    %v742 = vpop.permute.xlu0 %741
    %743 = vrot.lane.b32.xlu0 %v737, 17
    %v744 = vpop.permute.xlu0 %743
    %745 = vrot.lane.b32.xlu0 %v738, 17
    %v746 = vpop.permute.xlu0 %745
    %v747 = vlaneseq
    %v748 = vand.u32 %v747, 127
    %vm749 = vcmp.lt.s32.totalorder %v748, 17
    %v750 = vsel %vm749, %v744, %v746
    %v751 = vsel %vm749, %v742, %v744
    %v752 = vsel %vm749, %v740, %v742
    %v753 = vsel %vm749, %v746, %v740
    %v754 = vld [vmem:[#allocation5] ss:$8 sm:$0xf]
    %v756 = vperm.slane %v754, 0
    %v757 = vperm.slane %v754, 1
    %v758 = vperm.slane %v754, 2
    %v759 = vperm.slane %v754, 3
    %v764 = vmul.f32 %v753, %v756
    %v765 = vmul.f32 %v752, %v757
    %v766 = vmul.f32 %v751, %v758
    %v767 = vmul.f32 %v750, %v759
    %768 = vrot.lane.b32.xlu0 %v735, 16
    %v769 = vpop.permute.xlu0 %768
    %770 = vrot.lane.b32.xlu0 %v736, 16
    %v771 = vpop.permute.xlu0 %770
    %772 = vrot.lane.b32.xlu0 %v737, 16
    %v773 = vpop.permute.xlu0 %772
    %774 = vrot.lane.b32.xlu0 %v738, 16
    %v775 = vpop.permute.xlu0 %774
    %vm776 = vcmp.lt.s32.totalorder %v748, 16
    %v777 = vsel %vm776, %v773, %v775
    %v778 = vsel %vm776, %v771, %v773
    %v779 = vsel %vm776, %v769, %v771
    %v780 = vsel %vm776, %v775, %v769
    %s781 = scalar_lea.vmem [#allocation5], 1
    %v782 = vld [vmem:[%s781] ss:$8 sm:$0xf]
    %v784 = vperm.slane %v782, 0
    %v785 = vperm.slane %v782, 1
    %v786 = vperm.slane %v782, 2
    %v787 = vperm.slane %v782, 3
    %v792 = vmul.f32 %v780, %v784
    %v793 = vmul.f32 %v779, %v785
    %v794 = vmul.f32 %v778, %v786
    %v795 = vmul.f32 %v777, %v787
    %796 = vrot.lane.b32.xlu0 %v735, 15
    %v797 = vpop.permute.xlu0 %796
    %798 = vrot.lane.b32.xlu0 %v736, 15
    %v799 = vpop.permute.xlu0 %798
    %800 = vrot.lane.b32.xlu0 %v737, 15
    %v801 = vpop.permute.xlu0 %800
    %802 = vrot.lane.b32.xlu0 %v738, 15
    %v803 = vpop.permute.xlu0 %802
    %vm804 = vcmp.lt.s32.totalorder %v748, 15
    %v805 = vsel %vm804, %v801, %v803
    %v806 = vsel %vm804, %v799, %v801
    %v807 = vsel %vm804, %v797, %v799
    %v808 = vsel %vm804, %v803, %v797
    %s809 = scalar_lea.vmem [#allocation5], 2
    %v810 = vld [vmem:[%s809] ss:$8 sm:$0xf]
    %v812 = vperm.slane %v810, 0
    %v813 = vperm.slane %v810, 1
    %v814 = vperm.slane %v810, 2
    %v815 = vperm.slane %v810, 3
    %v820 = vmul.f32 %v808, %v812
    %v821 = vmul.f32 %v807, %v813
    %v822 = vmul.f32 %v806, %v814
    %v823 = vmul.f32 %v805, %v815
    %824 = vrot.lane.b32.xlu0 %v735, 1
    %v825 = vpop.permute.xlu0 %824
    %826 = vrot.lane.b32.xlu0 %v736, 1
    %v827 = vpop.permute.xlu0 %826
    %828 = vrot.lane.b32.xlu0 %v737, 1
    %v829 = vpop.permute.xlu0 %828
    %830 = vrot.lane.b32.xlu0 %v738, 1
    %v831 = vpop.permute.xlu0 %830
    %vm832 = vcmp.lt.s32.totalorder %v748, 1
    %v833 = vsel %vm832, %v829, %v831
    %v834 = vsel %vm832, %v827, %v829
    %v835 = vsel %vm832, %v825, %v827
    %v836 = vsel %vm832, %v831, %v825
    %s837 = scalar_lea.vmem [#allocation5], 3
    %v838 = vld [vmem:[%s837] ss:$8 sm:$0xf]
    %v840 = vperm.slane %v838, 0
    %v841 = vperm.slane %v838, 1
    %v842 = vperm.slane %v838, 2
    %v843 = vperm.slane %v838, 3
    %v848 = vmul.f32 %v836, %v840
    %v849 = vmul.f32 %v835, %v841
    %v850 = vmul.f32 %v834, %v842
    %v851 = vmul.f32 %v833, %v843
    %852 = vrot.lane.b32.xlu0 %v735, 127
    %v853 = vpop.permute.xlu0 %852
    %854 = vrot.lane.b32.xlu0 %v736, 127
    %v855 = vpop.permute.xlu0 %854
    %856 = vrot.lane.b32.xlu0 %v737, 127
    %v857 = vpop.permute.xlu0 %856
    %858 = vrot.lane.b32.xlu0 %v738, 127
    %v859 = vpop.permute.xlu0 %858
    %vm860 = vcmp.lt.s32.totalorder %v748, 127
    %v861 = vsel %vm860, %v857, %v859
    %v862 = vsel %vm860, %v855, %v857
    %v863 = vsel %vm860, %v853, %v855
    %v864 = vsel %vm860, %v859, %v853
    %s865 = scalar_lea.vmem [#allocation5], 5
    %v866 = vld [vmem:[%s865] ss:$8 sm:$0xf]
    %v868 = vperm.slane %v866, 0
    %v869 = vperm.slane %v866, 1
    %v870 = vperm.slane %v866, 2
    %v871 = vperm.slane %v866, 3
    %v876 = vmul.f32 %v863, %v868
    %v877 = vmul.f32 %v862, %v869
    %v878 = vmul.f32 %v861, %v870
    %v879 = vmul.f32 %v864, %v871
    %880 = vrot.lane.b32.xlu0 %v735, 113
    %v881 = vpop.permute.xlu0 %880
    %882 = vrot.lane.b32.xlu0 %v736, 113
    %v883 = vpop.permute.xlu0 %882
    %884 = vrot.lane.b32.xlu0 %v737, 113
    %v885 = vpop.permute.xlu0 %884
    %886 = vrot.lane.b32.xlu0 %v738, 113
    %v887 = vpop.permute.xlu0 %886
    %vm888 = vcmp.lt.s32.totalorder %v748, 113
    %v889 = vsel %vm888, %v885, %v887
    %v890 = vsel %vm888, %v883, %v885
    %v891 = vsel %vm888, %v881, %v883
    %v892 = vsel %vm888, %v887, %v881
    %s893 = scalar_lea.vmem [#allocation5], 6
    %v894 = vld [vmem:[%s893] ss:$8 sm:$0xf]
    %v896 = vperm.slane %v894, 0
    %v897 = vperm.slane %v894, 1
    %v898 = vperm.slane %v894, 2
    %v899 = vperm.slane %v894, 3
    %v904 = vmul.f32 %v891, %v896
    %v905 = vmul.f32 %v890, %v897
    %v906 = vmul.f32 %v889, %v898
    %v907 = vmul.f32 %v892, %v899
    %908 = vrot.lane.b32.xlu0 %v735, 112
    %v909 = vpop.permute.xlu0 %908
    %910 = vrot.lane.b32.xlu0 %v736, 112
    %v911 = vpop.permute.xlu0 %910
    %912 = vrot.lane.b32.xlu0 %v737, 112
    %v913 = vpop.permute.xlu0 %912
    %914 = vrot.lane.b32.xlu0 %v738, 112
    %v915 = vpop.permute.xlu0 %914
    %vm916 = vcmp.lt.s32.totalorder %v748, 112
    %v917 = vsel %vm916, %v913, %v915
    %v918 = vsel %vm916, %v911, %v913
    %v919 = vsel %vm916, %v909, %v911
    %v920 = vsel %vm916, %v915, %v909
    %s921 = scalar_lea.vmem [#allocation5], 7
    %v922 = vld [vmem:[%s921] ss:$8 sm:$0xf]
    %v924 = vperm.slane %v922, 0
    %v925 = vperm.slane %v922, 1
    %v926 = vperm.slane %v922, 2
    %v927 = vperm.slane %v922, 3
    %v932 = vmul.f32 %v919, %v924
    %v933 = vmul.f32 %v918, %v925
    %v934 = vmul.f32 %v917, %v926
    %v935 = vmul.f32 %v920, %v927
    %936 = vrot.lane.b32.xlu0 %v735, 111
    %v937 = vpop.permute.xlu0 %936
    %938 = vrot.lane.b32.xlu0 %v736, 111
    %v939 = vpop.permute.xlu0 %938
    %940 = vrot.lane.b32.xlu0 %v737, 111
    %v941 = vpop.permute.xlu0 %940
    %942 = vrot.lane.b32.xlu0 %v738, 111
    %v943 = vpop.permute.xlu0 %942
    %vm944 = vcmp.lt.s32.totalorder %v748, 111
    %v945 = vsel %vm944, %v941, %v943
    %v946 = vsel %vm944, %v939, %v941
    %v947 = vsel %vm944, %v937, %v939
    %v948 = vsel %vm944, %v943, %v937
    %s949 = scalar_lea.vmem [#allocation5], 32
    %v950 = vld [vmem:[%s949] ss:$8 sm:$0xf]
    %v952 = vperm.slane %v950, 0
    %v953 = vperm.slane %v950, 1
    %v954 = vperm.slane %v950, 2
    %v955 = vperm.slane %v950, 3
    %v960 = vmul.f32 %v947, %v952
    %v961 = vmul.f32 %v946, %v953
    %v962 = vmul.f32 %v945, %v954
    %v963 = vmul.f32 %v948, %v955
    %v964 = vld [vmem:[%s5] sm:$0xff]
    %vm965 = vcmask 588800
    %v967 = vsel %vm965, %v964, 0
    %969 = vmatpush.msra.mxu0 0.0
    %970 = vmatpush.msra.mxu0 0.0
    %971 = vmatpush.msra.mxu0 0.0
    %972 = vmatpush.msra.mxu0 0.0
    %973 = vmatpush.msra.mxu0 0.0
    %974 = vmatpush.msra.mxu0 0.0
    %975 = vmatpush.msra.mxu0 0.0
    %v976 = vand.u32 %v960, 4294901760
    %977 = vmatpush.msra.mxu0 %v976
    %v978 = vand.u32 %v932, 4294901760
    %979 = vmatpush.msra.mxu0 %v978
    %v980 = vand.u32 %v904, 4294901760
    %981 = vmatpush.msra.mxu0 %v980
    %v982 = vand.u32 %v876, 4294901760
    %983 = vmatpush.msra.mxu0 %v982
    %v984 = vand.u32 %v735, 4294901760
    %985 = vmatpush.msra.mxu0 %v984
    %v986 = vand.u32 %v848, 4294901760
    %987 = vmatpush.msra.mxu0 %v986
    %v988 = vand.u32 %v820, 4294901760
    %989 = vmatpush.msra.mxu0 %v988
    %v990 = vand.u32 %v792, 4294901760
    %991 = vmatpush.msra.mxu0 %v990
    %v992 = vand.u32 %v764, 4294901760
    %993 = vmatpush.msra.mxu0 %v992
    %v994 = vand.u32 %v967, 4294901760
    %v995 = vsub.f32 %v967, %v994
    %v996 = vand.u32 %v995, 4294901760
    %v997 = vsub.f32 %v995, %v996
    %v998 = vand.u32 %v997, 4294901760
    %999 = vmatmul.f32.gmra.mxu0 %v998
    %v1000 = vpop.f32.mrf.mxu0
    %v1001 = vadd.f32 0.0, %v1000
    %1002 = vdwg.mxu0
    %1003 = vmatpush.msra.mxu0 0.0
    %1004 = vmatpush.msra.mxu0 0.0
    %1005 = vmatpush.msra.mxu0 0.0
    %1006 = vmatpush.msra.mxu0 0.0
    %1007 = vmatpush.msra.mxu0 0.0
    %1008 = vmatpush.msra.mxu0 0.0
    %1009 = vmatpush.msra.mxu0 0.0
    %v1010 = vand.u32 %v960, 4294901760
    %v1011 = vsub.f32 %v960, %v1010
    %v1012 = vand.u32 %v1011, 4294901760
    %v1013 = vsub.f32 %v1011, %v1012
    %v1014 = vand.u32 %v1013, 4294901760
    %1015 = vmatpush.msra.mxu0 %v1014
    %v1016 = vand.u32 %v932, 4294901760
    %v1017 = vsub.f32 %v932, %v1016
    %v1018 = vand.u32 %v1017, 4294901760
    %v1019 = vsub.f32 %v1017, %v1018
    %v1020 = vand.u32 %v1019, 4294901760
    %1021 = vmatpush.msra.mxu0 %v1020
    %v1022 = vand.u32 %v904, 4294901760
    %v1023 = vsub.f32 %v904, %v1022
    %v1024 = vand.u32 %v1023, 4294901760
    %v1025 = vsub.f32 %v1023, %v1024
    %v1026 = vand.u32 %v1025, 4294901760
    %1027 = vmatpush.msra.mxu0 %v1026
    %v1028 = vand.u32 %v876, 4294901760
    %v1029 = vsub.f32 %v876, %v1028
    %v1030 = vand.u32 %v1029, 4294901760
    %v1031 = vsub.f32 %v1029, %v1030
    %v1032 = vand.u32 %v1031, 4294901760
    %1033 = vmatpush.msra.mxu0 %v1032
    %v1034 = vand.u32 %v735, 4294901760
    %v1035 = vsub.f32 %v735, %v1034
    %v1036 = vand.u32 %v1035, 4294901760
    %v1037 = vsub.f32 %v1035, %v1036
    %v1038 = vand.u32 %v1037, 4294901760
    %1039 = vmatpush.msra.mxu0 %v1038
    %v1040 = vand.u32 %v848, 4294901760
    %v1041 = vsub.f32 %v848, %v1040
    %v1042 = vand.u32 %v1041, 4294901760
    %v1043 = vsub.f32 %v1041, %v1042
    %v1044 = vand.u32 %v1043, 4294901760
    %1045 = vmatpush.msra.mxu0 %v1044
    %v1046 = vand.u32 %v820, 4294901760
    %v1047 = vsub.f32 %v820, %v1046
    %v1048 = vand.u32 %v1047, 4294901760
    %v1049 = vsub.f32 %v1047, %v1048
    %v1050 = vand.u32 %v1049, 4294901760
    %1051 = vmatpush.msra.mxu0 %v1050
    %v1052 = vand.u32 %v792, 4294901760
    %v1053 = vsub.f32 %v792, %v1052
    %v1054 = vand.u32 %v1053, 4294901760
    %v1055 = vsub.f32 %v1053, %v1054
    %v1056 = vand.u32 %v1055, 4294901760
    %1057 = vmatpush.msra.mxu0 %v1056
    %v1058 = vand.u32 %v764, 4294901760
    %v1059 = vsub.f32 %v764, %v1058
    %v1060 = vand.u32 %v1059, 4294901760
    %v1061 = vsub.f32 %v1059, %v1060
    %v1062 = vand.u32 %v1061, 4294901760
    %1063 = vmatpush.msra.mxu0 %v1062
    %v1064 = vand.u32 %v967, 4294901760
    %1065 = vmatmul.f32.gmra.mxu0 %v1064
    %v1066 = vpop.f32.mrf.mxu0
    %v1067 = vadd.f32 %v1001, %v1066
    %1068 = vdwg.mxu0
    %1069 = vmatpush.msra.mxu0 0.0
    %1070 = vmatpush.msra.mxu0 0.0
    %1071 = vmatpush.msra.mxu0 0.0
    %1072 = vmatpush.msra.mxu0 0.0
    %1073 = vmatpush.msra.mxu0 0.0
    %1074 = vmatpush.msra.mxu0 0.0
    %1075 = vmatpush.msra.mxu0 0.0
    %v1076 = vand.u32 %v960, 4294901760
    %v1077 = vsub.f32 %v960, %v1076
    %1078 = vmatpush.msra.mxu0 %v1077
    %v1079 = vand.u32 %v932, 4294901760
    %v1080 = vsub.f32 %v932, %v1079
    %1081 = vmatpush.msra.mxu0 %v1080
    %v1082 = vand.u32 %v904, 4294901760
    %v1083 = vsub.f32 %v904, %v1082
    %1084 = vmatpush.msra.mxu0 %v1083
    %v1085 = vand.u32 %v876, 4294901760
    %v1086 = vsub.f32 %v876, %v1085
    %1087 = vmatpush.msra.mxu0 %v1086
    %v1088 = vand.u32 %v735, 4294901760
    %v1089 = vsub.f32 %v735, %v1088
    %1090 = vmatpush.msra.mxu0 %v1089
    %v1091 = vand.u32 %v848, 4294901760
    %v1092 = vsub.f32 %v848, %v1091
    %1093 = vmatpush.msra.mxu0 %v1092
    %v1094 = vand.u32 %v820, 4294901760
    %v1095 = vsub.f32 %v820, %v1094
    %1096 = vmatpush.msra.mxu0 %v1095
    %v1097 = vand.u32 %v792, 4294901760
    %v1098 = vsub.f32 %v792, %v1097
    %1099 = vmatpush.msra.mxu0 %v1098
    %v1100 = vand.u32 %v764, 4294901760
    %v1101 = vsub.f32 %v764, %v1100
    %1102 = vmatpush.msra.mxu0 %v1101
    %v1103 = vand.u32 %v967, 4294901760
    %v1104 = vsub.f32 %v967, %v1103
    %1105 = vmatmul.f32.gmra.mxu0 %v1104
    %v1106 = vpop.f32.mrf.mxu0
    %v1107 = vadd.f32 %v1067, %v1106
    %1108 = vdwg.mxu0
    %1109 = vmatpush.msra.mxu0 0.0
    %1110 = vmatpush.msra.mxu0 0.0
    %1111 = vmatpush.msra.mxu0 0.0
    %1112 = vmatpush.msra.mxu0 0.0
    %1113 = vmatpush.msra.mxu0 0.0
    %1114 = vmatpush.msra.mxu0 0.0
    %1115 = vmatpush.msra.mxu0 0.0
    %v1116 = vand.u32 %v960, 4294901760
    %1117 = vmatpush.msra.mxu0 %v1116
    %v1118 = vand.u32 %v932, 4294901760
    %1119 = vmatpush.msra.mxu0 %v1118
    %v1120 = vand.u32 %v904, 4294901760
    %1121 = vmatpush.msra.mxu0 %v1120
    %v1122 = vand.u32 %v876, 4294901760
    %1123 = vmatpush.msra.mxu0 %v1122
    %v1124 = vand.u32 %v735, 4294901760
    %1125 = vmatpush.msra.mxu0 %v1124
    %v1126 = vand.u32 %v848, 4294901760
    %1127 = vmatpush.msra.mxu0 %v1126
    %v1128 = vand.u32 %v820, 4294901760
    %1129 = vmatpush.msra.mxu0 %v1128
    %v1130 = vand.u32 %v792, 4294901760
    %1131 = vmatpush.msra.mxu0 %v1130
    %v1132 = vand.u32 %v764, 4294901760
    %1133 = vmatpush.msra.mxu0 %v1132
    %v1134 = vand.u32 %v967, 4294901760
    %v1135 = vsub.f32 %v967, %v1134
    %v1136 = vand.u32 %v1135, 4294901760
    %1137 = vmatmul.f32.gmra.mxu0 %v1136
    %v1138 = vpop.f32.mrf.mxu0
    %v1139 = vadd.f32 %v1107, %v1138
    %1140 = vdwg.mxu0
    %1141 = vmatpush.msra.mxu0 0.0
    %1142 = vmatpush.msra.mxu0 0.0
    %1143 = vmatpush.msra.mxu0 0.0
    %1144 = vmatpush.msra.mxu0 0.0
    %1145 = vmatpush.msra.mxu0 0.0
    %1146 = vmatpush.msra.mxu0 0.0
    %1147 = vmatpush.msra.mxu0 0.0
    %v1148 = vand.u32 %v960, 4294901760
    %v1149 = vsub.f32 %v960, %v1148
    %v1150 = vand.u32 %v1149, 4294901760
    %1151 = vmatpush.msra.mxu0 %v1150
    %v1152 = vand.u32 %v932, 4294901760
    %v1153 = vsub.f32 %v932, %v1152
    %v1154 = vand.u32 %v1153, 4294901760
    %1155 = vmatpush.msra.mxu0 %v1154
    %v1156 = vand.u32 %v904, 4294901760
    %v1157 = vsub.f32 %v904, %v1156
    %v1158 = vand.u32 %v1157, 4294901760
    %1159 = vmatpush.msra.mxu0 %v1158
    %v1160 = vand.u32 %v876, 4294901760
    %v1161 = vsub.f32 %v876, %v1160
    %v1162 = vand.u32 %v1161, 4294901760
    %1163 = vmatpush.msra.mxu0 %v1162
    %v1164 = vand.u32 %v735, 4294901760
    %v1165 = vsub.f32 %v735, %v1164
    %v1166 = vand.u32 %v1165, 4294901760
    %1167 = vmatpush.msra.mxu0 %v1166
    %v1168 = vand.u32 %v848, 4294901760
    %v1169 = vsub.f32 %v848, %v1168
    %v1170 = vand.u32 %v1169, 4294901760
    %1171 = vmatpush.msra.mxu0 %v1170
    %v1172 = vand.u32 %v820, 4294901760
    %v1173 = vsub.f32 %v820, %v1172
    %v1174 = vand.u32 %v1173, 4294901760
    %1175 = vmatpush.msra.mxu0 %v1174
    %v1176 = vand.u32 %v792, 4294901760
    %v1177 = vsub.f32 %v792, %v1176
    %v1178 = vand.u32 %v1177, 4294901760
    %1179 = vmatpush.msra.mxu0 %v1178
    %v1180 = vand.u32 %v764, 4294901760
    %v1181 = vsub.f32 %v764, %v1180
    %v1182 = vand.u32 %v1181, 4294901760
    %1183 = vmatpush.msra.mxu0 %v1182
    %v1184 = vand.u32 %v967, 4294901760
    %1185 = vmatmul.f32.gmra.mxu0 %v1184
    %v1186 = vpop.f32.mrf.mxu0
    %v1187 = vadd.f32 %v1139, %v1186
    %1188 = vdwg.mxu0
    %1189 = vmatpush.msra.mxu0 0.0
    %1190 = vmatpush.msra.mxu0 0.0
    %1191 = vmatpush.msra.mxu0 0.0
    %1192 = vmatpush.msra.mxu0 0.0
    %1193 = vmatpush.msra.mxu0 0.0
    %1194 = vmatpush.msra.mxu0 0.0
    %1195 = vmatpush.msra.mxu0 0.0
    %v1196 = vand.u32 %v960, 4294901760
    %1197 = vmatpush.msra.mxu0 %v1196
    %v1198 = vand.u32 %v932, 4294901760
    %1199 = vmatpush.msra.mxu0 %v1198
    %v1200 = vand.u32 %v904, 4294901760
    %1201 = vmatpush.msra.mxu0 %v1200
    %v1202 = vand.u32 %v876, 4294901760
    %1203 = vmatpush.msra.mxu0 %v1202
    %v1204 = vand.u32 %v735, 4294901760
    %1205 = vmatpush.msra.mxu0 %v1204
    %v1206 = vand.u32 %v848, 4294901760
    %1207 = vmatpush.msra.mxu0 %v1206
    %v1208 = vand.u32 %v820, 4294901760
    %1209 = vmatpush.msra.mxu0 %v1208
    %v1210 = vand.u32 %v792, 4294901760
    %1211 = vmatpush.msra.mxu0 %v1210
    %v1212 = vand.u32 %v764, 4294901760
    %1213 = vmatpush.msra.mxu0 %v1212
    %v1214 = vand.u32 %v967, 4294901760
    %1215 = vmatmul.f32.gmra.mxu0 %v1214
    %v1216 = vpop.f32.mrf.mxu0
    %v1217 = vadd.f32 %v1187, %v1216
    %1218 = vdwg.mxu0
    %1219 = vmatpush.msra.mxu0 0.0
    %1220 = vmatpush.msra.mxu0 0.0
    %1221 = vmatpush.msra.mxu0 0.0
    %1222 = vmatpush.msra.mxu0 0.0
    %1223 = vmatpush.msra.mxu0 0.0
    %1224 = vmatpush.msra.mxu0 0.0
    %1225 = vmatpush.msra.mxu0 0.0
    %v1226 = vand.u32 %v961, 4294901760
    %1227 = vmatpush.msra.mxu0 %v1226
    %v1228 = vand.u32 %v933, 4294901760
    %1229 = vmatpush.msra.mxu0 %v1228
    %v1230 = vand.u32 %v905, 4294901760
    %1231 = vmatpush.msra.mxu0 %v1230
    %v1232 = vand.u32 %v877, 4294901760
    %1233 = vmatpush.msra.mxu0 %v1232
    %v1234 = vand.u32 %v736, 4294901760
    %1235 = vmatpush.msra.mxu0 %v1234
    %v1236 = vand.u32 %v849, 4294901760
    %1237 = vmatpush.msra.mxu0 %v1236
    %v1238 = vand.u32 %v821, 4294901760
    %1239 = vmatpush.msra.mxu0 %v1238
    %v1240 = vand.u32 %v793, 4294901760
    %1241 = vmatpush.msra.mxu0 %v1240
    %v1242 = vand.u32 %v765, 4294901760
    %1243 = vmatpush.msra.mxu0 %v1242
    %v1244 = vand.u32 %v967, 4294901760
    %v1245 = vsub.f32 %v967, %v1244
    %v1246 = vand.u32 %v1245, 4294901760
    %v1247 = vsub.f32 %v1245, %v1246
    %v1248 = vand.u32 %v1247, 4294901760
    %1249 = vmatmul.f32.gmra.mxu0 %v1248
    %v1250 = vpop.f32.mrf.mxu0
    %v1251 = vadd.f32 0.0, %v1250
    %1252 = vdwg.mxu0
    %1253 = vmatpush.msra.mxu0 0.0
    %1254 = vmatpush.msra.mxu0 0.0
    %1255 = vmatpush.msra.mxu0 0.0
    %1256 = vmatpush.msra.mxu0 0.0
    %1257 = vmatpush.msra.mxu0 0.0
    %1258 = vmatpush.msra.mxu0 0.0
    %1259 = vmatpush.msra.mxu0 0.0
    %v1260 = vand.u32 %v961, 4294901760
    %v1261 = vsub.f32 %v961, %v1260
    %v1262 = vand.u32 %v1261, 4294901760
    %v1263 = vsub.f32 %v1261, %v1262
    %v1264 = vand.u32 %v1263, 4294901760
    %1265 = vmatpush.msra.mxu0 %v1264
    %v1266 = vand.u32 %v933, 4294901760
    %v1267 = vsub.f32 %v933, %v1266
    %v1268 = vand.u32 %v1267, 4294901760
    %v1269 = vsub.f32 %v1267, %v1268
    %v1270 = vand.u32 %v1269, 4294901760
    %1271 = vmatpush.msra.mxu0 %v1270
    %v1272 = vand.u32 %v905, 4294901760
    %v1273 = vsub.f32 %v905, %v1272
    %v1274 = vand.u32 %v1273, 4294901760
    %v1275 = vsub.f32 %v1273, %v1274
    %v1276 = vand.u32 %v1275, 4294901760
    %1277 = vmatpush.msra.mxu0 %v1276
    %v1278 = vand.u32 %v877, 4294901760
    %v1279 = vsub.f32 %v877, %v1278
    %v1280 = vand.u32 %v1279, 4294901760
    %v1281 = vsub.f32 %v1279, %v1280
    %v1282 = vand.u32 %v1281, 4294901760
    %1283 = vmatpush.msra.mxu0 %v1282
    %v1284 = vand.u32 %v736, 4294901760
    %v1285 = vsub.f32 %v736, %v1284
    %v1286 = vand.u32 %v1285, 4294901760
    %v1287 = vsub.f32 %v1285, %v1286
    %v1288 = vand.u32 %v1287, 4294901760
    %1289 = vmatpush.msra.mxu0 %v1288
    %v1290 = vand.u32 %v849, 4294901760
    %v1291 = vsub.f32 %v849, %v1290
    %v1292 = vand.u32 %v1291, 4294901760
    %v1293 = vsub.f32 %v1291, %v1292
    %v1294 = vand.u32 %v1293, 4294901760
    %1295 = vmatpush.msra.mxu0 %v1294
    %v1296 = vand.u32 %v821, 4294901760
    %v1297 = vsub.f32 %v821, %v1296
    %v1298 = vand.u32 %v1297, 4294901760
    %v1299 = vsub.f32 %v1297, %v1298
    %v1300 = vand.u32 %v1299, 4294901760
    %1301 = vmatpush.msra.mxu0 %v1300
    %v1302 = vand.u32 %v793, 4294901760
    %v1303 = vsub.f32 %v793, %v1302
    %v1304 = vand.u32 %v1303, 4294901760
    %v1305 = vsub.f32 %v1303, %v1304
    %v1306 = vand.u32 %v1305, 4294901760
    %1307 = vmatpush.msra.mxu0 %v1306
    %v1308 = vand.u32 %v765, 4294901760
    %v1309 = vsub.f32 %v765, %v1308
    %v1310 = vand.u32 %v1309, 4294901760
    %v1311 = vsub.f32 %v1309, %v1310
    %v1312 = vand.u32 %v1311, 4294901760
    %1313 = vmatpush.msra.mxu0 %v1312
    %v1314 = vand.u32 %v967, 4294901760
    %1315 = vmatmul.f32.gmra.mxu0 %v1314
    %v1316 = vpop.f32.mrf.mxu0
    %v1317 = vadd.f32 %v1251, %v1316
    %1318 = vdwg.mxu0
    %1319 = vmatpush.msra.mxu0 0.0
    %1320 = vmatpush.msra.mxu0 0.0
    %1321 = vmatpush.msra.mxu0 0.0
    %1322 = vmatpush.msra.mxu0 0.0
    %1323 = vmatpush.msra.mxu0 0.0
    %1324 = vmatpush.msra.mxu0 0.0
    %1325 = vmatpush.msra.mxu0 0.0
    %v1326 = vand.u32 %v961, 4294901760
    %v1327 = vsub.f32 %v961, %v1326
    %1328 = vmatpush.msra.mxu0 %v1327
    %v1329 = vand.u32 %v933, 4294901760
    %v1330 = vsub.f32 %v933, %v1329
    %1331 = vmatpush.msra.mxu0 %v1330
    %v1332 = vand.u32 %v905, 4294901760
    %v1333 = vsub.f32 %v905, %v1332
    %1334 = vmatpush.msra.mxu0 %v1333
    %v1335 = vand.u32 %v877, 4294901760
    %v1336 = vsub.f32 %v877, %v1335
    %1337 = vmatpush.msra.mxu0 %v1336
    %v1338 = vand.u32 %v736, 4294901760
    %v1339 = vsub.f32 %v736, %v1338
    %1340 = vmatpush.msra.mxu0 %v1339
    %v1341 = vand.u32 %v849, 4294901760
    %v1342 = vsub.f32 %v849, %v1341
    %1343 = vmatpush.msra.mxu0 %v1342
    %v1344 = vand.u32 %v821, 4294901760
    %v1345 = vsub.f32 %v821, %v1344
    %1346 = vmatpush.msra.mxu0 %v1345
    %v1347 = vand.u32 %v793, 4294901760
    %v1348 = vsub.f32 %v793, %v1347
    %1349 = vmatpush.msra.mxu0 %v1348
    %v1350 = vand.u32 %v765, 4294901760
    %v1351 = vsub.f32 %v765, %v1350
    %1352 = vmatpush.msra.mxu0 %v1351
    %v1353 = vand.u32 %v967, 4294901760
    %v1354 = vsub.f32 %v967, %v1353
    %1355 = vmatmul.f32.gmra.mxu0 %v1354
    %v1356 = vpop.f32.mrf.mxu0
    %v1357 = vadd.f32 %v1317, %v1356
    %1358 = vdwg.mxu0
    %1359 = vmatpush.msra.mxu0 0.0
    %1360 = vmatpush.msra.mxu0 0.0
    %1361 = vmatpush.msra.mxu0 0.0
    %1362 = vmatpush.msra.mxu0 0.0
    %1363 = vmatpush.msra.mxu0 0.0
    %1364 = vmatpush.msra.mxu0 0.0
    %1365 = vmatpush.msra.mxu0 0.0
    %v1366 = vand.u32 %v961, 4294901760
    %1367 = vmatpush.msra.mxu0 %v1366
    %v1368 = vand.u32 %v933, 4294901760
    %1369 = vmatpush.msra.mxu0 %v1368
    %v1370 = vand.u32 %v905, 4294901760
    %1371 = vmatpush.msra.mxu0 %v1370
    %v1372 = vand.u32 %v877, 4294901760
    %1373 = vmatpush.msra.mxu0 %v1372
    %v1374 = vand.u32 %v736, 4294901760
    %1375 = vmatpush.msra.mxu0 %v1374
    %v1376 = vand.u32 %v849, 4294901760
    %1377 = vmatpush.msra.mxu0 %v1376
    %v1378 = vand.u32 %v821, 4294901760
    %1379 = vmatpush.msra.mxu0 %v1378
    %v1380 = vand.u32 %v793, 4294901760
    %1381 = vmatpush.msra.mxu0 %v1380
    %v1382 = vand.u32 %v765, 4294901760
    %1383 = vmatpush.msra.mxu0 %v1382
    %v1384 = vand.u32 %v967, 4294901760
    %v1385 = vsub.f32 %v967, %v1384
    %v1386 = vand.u32 %v1385, 4294901760
    %1387 = vmatmul.f32.gmra.mxu0 %v1386
    %v1388 = vpop.f32.mrf.mxu0
    %v1389 = vadd.f32 %v1357, %v1388
    %1390 = vdwg.mxu0
    %1391 = vmatpush.msra.mxu0 0.0
    %1392 = vmatpush.msra.mxu0 0.0
    %1393 = vmatpush.msra.mxu0 0.0
    %1394 = vmatpush.msra.mxu0 0.0
    %1395 = vmatpush.msra.mxu0 0.0
    %1396 = vmatpush.msra.mxu0 0.0
    %1397 = vmatpush.msra.mxu0 0.0
    %v1398 = vand.u32 %v961, 4294901760
    %v1399 = vsub.f32 %v961, %v1398
    %v1400 = vand.u32 %v1399, 4294901760
    %1401 = vmatpush.msra.mxu0 %v1400
    %v1402 = vand.u32 %v933, 4294901760
    %v1403 = vsub.f32 %v933, %v1402
    %v1404 = vand.u32 %v1403, 4294901760
    %1405 = vmatpush.msra.mxu0 %v1404
    %v1406 = vand.u32 %v905, 4294901760
    %v1407 = vsub.f32 %v905, %v1406
    %v1408 = vand.u32 %v1407, 4294901760
    %1409 = vmatpush.msra.mxu0 %v1408
    %v1410 = vand.u32 %v877, 4294901760
    %v1411 = vsub.f32 %v877, %v1410
    %v1412 = vand.u32 %v1411, 4294901760
    %1413 = vmatpush.msra.mxu0 %v1412
    %v1414 = vand.u32 %v736, 4294901760
    %v1415 = vsub.f32 %v736, %v1414
    %v1416 = vand.u32 %v1415, 4294901760
    %1417 = vmatpush.msra.mxu0 %v1416
    %v1418 = vand.u32 %v849, 4294901760
    %v1419 = vsub.f32 %v849, %v1418
    %v1420 = vand.u32 %v1419, 4294901760
    %1421 = vmatpush.msra.mxu0 %v1420
    %v1422 = vand.u32 %v821, 4294901760
    %v1423 = vsub.f32 %v821, %v1422
    %v1424 = vand.u32 %v1423, 4294901760
    %1425 = vmatpush.msra.mxu0 %v1424
    %v1426 = vand.u32 %v793, 4294901760
    %v1427 = vsub.f32 %v793, %v1426
    %v1428 = vand.u32 %v1427, 4294901760
    %1429 = vmatpush.msra.mxu0 %v1428
    %v1430 = vand.u32 %v765, 4294901760
    %v1431 = vsub.f32 %v765, %v1430
    %v1432 = vand.u32 %v1431, 4294901760
    %1433 = vmatpush.msra.mxu0 %v1432
    %v1434 = vand.u32 %v967, 4294901760
    %1435 = vmatmul.f32.gmra.mxu0 %v1434
    %v1436 = vpop.f32.mrf.mxu0
    %v1437 = vadd.f32 %v1389, %v1436
    %1438 = vdwg.mxu0
    %1439 = vmatpush.msra.mxu0 0.0
    %1440 = vmatpush.msra.mxu0 0.0
    %1441 = vmatpush.msra.mxu0 0.0
    %1442 = vmatpush.msra.mxu0 0.0
    %1443 = vmatpush.msra.mxu0 0.0
    %1444 = vmatpush.msra.mxu0 0.0
    %1445 = vmatpush.msra.mxu0 0.0
    %v1446 = vand.u32 %v961, 4294901760
    %1447 = vmatpush.msra.mxu0 %v1446
    %v1448 = vand.u32 %v933, 4294901760
    %1449 = vmatpush.msra.mxu0 %v1448
    %v1450 = vand.u32 %v905, 4294901760
    %1451 = vmatpush.msra.mxu0 %v1450
    %v1452 = vand.u32 %v877, 4294901760
    %1453 = vmatpush.msra.mxu0 %v1452
    %v1454 = vand.u32 %v736, 4294901760
    %1455 = vmatpush.msra.mxu0 %v1454
    %v1456 = vand.u32 %v849, 4294901760
    %1457 = vmatpush.msra.mxu0 %v1456
    %v1458 = vand.u32 %v821, 4294901760
    %1459 = vmatpush.msra.mxu0 %v1458
    %v1460 = vand.u32 %v793, 4294901760
    %1461 = vmatpush.msra.mxu0 %v1460
    %v1462 = vand.u32 %v765, 4294901760
    %1463 = vmatpush.msra.mxu0 %v1462
    %v1464 = vand.u32 %v967, 4294901760
    %1465 = vmatmul.f32.gmra.mxu0 %v1464
    %v1466 = vpop.f32.mrf.mxu0
    %v1467 = vadd.f32 %v1437, %v1466
    %1468 = vdwg.mxu0
    %1469 = vmatpush.msra.mxu0 0.0
    %1470 = vmatpush.msra.mxu0 0.0
    %1471 = vmatpush.msra.mxu0 0.0
    %1472 = vmatpush.msra.mxu0 0.0
    %1473 = vmatpush.msra.mxu0 0.0
    %1474 = vmatpush.msra.mxu0 0.0
    %1475 = vmatpush.msra.mxu0 0.0
    %v1476 = vand.u32 %v962, 4294901760
    %1477 = vmatpush.msra.mxu0 %v1476
    %v1478 = vand.u32 %v934, 4294901760
    %1479 = vmatpush.msra.mxu0 %v1478
    %v1480 = vand.u32 %v906, 4294901760
    %1481 = vmatpush.msra.mxu0 %v1480
    %v1482 = vand.u32 %v878, 4294901760
    %1483 = vmatpush.msra.mxu0 %v1482
    %v1484 = vand.u32 %v737, 4294901760
    %1485 = vmatpush.msra.mxu0 %v1484
    %v1486 = vand.u32 %v850, 4294901760
    %1487 = vmatpush.msra.mxu0 %v1486
    %v1488 = vand.u32 %v822, 4294901760
    %1489 = vmatpush.msra.mxu0 %v1488
    %v1490 = vand.u32 %v794, 4294901760
    %1491 = vmatpush.msra.mxu0 %v1490
    %v1492 = vand.u32 %v766, 4294901760
    %1493 = vmatpush.msra.mxu0 %v1492
    %v1494 = vand.u32 %v967, 4294901760
    %v1495 = vsub.f32 %v967, %v1494
    %v1496 = vand.u32 %v1495, 4294901760
    %v1497 = vsub.f32 %v1495, %v1496
    %v1498 = vand.u32 %v1497, 4294901760
    %1499 = vmatmul.f32.gmra.mxu0 %v1498
    %v1500 = vpop.f32.mrf.mxu0
    %v1501 = vadd.f32 0.0, %v1500
    %1502 = vdwg.mxu0
    %1503 = vmatpush.msra.mxu0 0.0
    %1504 = vmatpush.msra.mxu0 0.0
    %1505 = vmatpush.msra.mxu0 0.0
    %1506 = vmatpush.msra.mxu0 0.0
    %1507 = vmatpush.msra.mxu0 0.0
    %1508 = vmatpush.msra.mxu0 0.0
    %1509 = vmatpush.msra.mxu0 0.0
    %v1510 = vand.u32 %v962, 4294901760
    %v1511 = vsub.f32 %v962, %v1510
    %v1512 = vand.u32 %v1511, 4294901760
    %v1513 = vsub.f32 %v1511, %v1512
    %v1514 = vand.u32 %v1513, 4294901760
    %1515 = vmatpush.msra.mxu0 %v1514
    %v1516 = vand.u32 %v934, 4294901760
    %v1517 = vsub.f32 %v934, %v1516
    %v1518 = vand.u32 %v1517, 4294901760
    %v1519 = vsub.f32 %v1517, %v1518
    %v1520 = vand.u32 %v1519, 4294901760
    %1521 = vmatpush.msra.mxu0 %v1520
    %v1522 = vand.u32 %v906, 4294901760
    %v1523 = vsub.f32 %v906, %v1522
    %v1524 = vand.u32 %v1523, 4294901760
    %v1525 = vsub.f32 %v1523, %v1524
    %v1526 = vand.u32 %v1525, 4294901760
    %1527 = vmatpush.msra.mxu0 %v1526
    %v1528 = vand.u32 %v878, 4294901760
    %v1529 = vsub.f32 %v878, %v1528
    %v1530 = vand.u32 %v1529, 4294901760
    %v1531 = vsub.f32 %v1529, %v1530
    %v1532 = vand.u32 %v1531, 4294901760
    %1533 = vmatpush.msra.mxu0 %v1532
    %v1534 = vand.u32 %v737, 4294901760
    %v1535 = vsub.f32 %v737, %v1534
    %v1536 = vand.u32 %v1535, 4294901760
    %v1537 = vsub.f32 %v1535, %v1536
    %v1538 = vand.u32 %v1537, 4294901760
    %1539 = vmatpush.msra.mxu0 %v1538
    %v1540 = vand.u32 %v850, 4294901760
    %v1541 = vsub.f32 %v850, %v1540
    %v1542 = vand.u32 %v1541, 4294901760
    %v1543 = vsub.f32 %v1541, %v1542
    %v1544 = vand.u32 %v1543, 4294901760
    %1545 = vmatpush.msra.mxu0 %v1544
    %v1546 = vand.u32 %v822, 4294901760
    %v1547 = vsub.f32 %v822, %v1546
    %v1548 = vand.u32 %v1547, 4294901760
    %v1549 = vsub.f32 %v1547, %v1548
    %v1550 = vand.u32 %v1549, 4294901760
    %1551 = vmatpush.msra.mxu0 %v1550
    %v1552 = vand.u32 %v794, 4294901760
    %v1553 = vsub.f32 %v794, %v1552
    %v1554 = vand.u32 %v1553, 4294901760
    %v1555 = vsub.f32 %v1553, %v1554
    %v1556 = vand.u32 %v1555, 4294901760
    %1557 = vmatpush.msra.mxu0 %v1556
    %v1558 = vand.u32 %v766, 4294901760
    %v1559 = vsub.f32 %v766, %v1558
    %v1560 = vand.u32 %v1559, 4294901760
    %v1561 = vsub.f32 %v1559, %v1560
    %v1562 = vand.u32 %v1561, 4294901760
    %1563 = vmatpush.msra.mxu0 %v1562
    %v1564 = vand.u32 %v967, 4294901760
    %1565 = vmatmul.f32.gmra.mxu0 %v1564
    %v1566 = vpop.f32.mrf.mxu0
    %v1567 = vadd.f32 %v1501, %v1566
    %1568 = vdwg.mxu0
    %1569 = vmatpush.msra.mxu0 0.0
    %1570 = vmatpush.msra.mxu0 0.0
    %1571 = vmatpush.msra.mxu0 0.0
    %1572 = vmatpush.msra.mxu0 0.0
    %1573 = vmatpush.msra.mxu0 0.0
    %1574 = vmatpush.msra.mxu0 0.0
    %1575 = vmatpush.msra.mxu0 0.0
    %v1576 = vand.u32 %v962, 4294901760
    %v1577 = vsub.f32 %v962, %v1576
    %1578 = vmatpush.msra.mxu0 %v1577
    %v1579 = vand.u32 %v934, 4294901760
    %v1580 = vsub.f32 %v934, %v1579
    %1581 = vmatpush.msra.mxu0 %v1580
    %v1582 = vand.u32 %v906, 4294901760
    %v1583 = vsub.f32 %v906, %v1582
    %1584 = vmatpush.msra.mxu0 %v1583
    %v1585 = vand.u32 %v878, 4294901760
    %v1586 = vsub.f32 %v878, %v1585
    %1587 = vmatpush.msra.mxu0 %v1586
    %v1588 = vand.u32 %v737, 4294901760
    %v1589 = vsub.f32 %v737, %v1588
    %1590 = vmatpush.msra.mxu0 %v1589
    %v1591 = vand.u32 %v850, 4294901760
    %v1592 = vsub.f32 %v850, %v1591
    %1593 = vmatpush.msra.mxu0 %v1592
    %v1594 = vand.u32 %v822, 4294901760
    %v1595 = vsub.f32 %v822, %v1594
    %1596 = vmatpush.msra.mxu0 %v1595
    %v1597 = vand.u32 %v794, 4294901760
    %v1598 = vsub.f32 %v794, %v1597
    %1599 = vmatpush.msra.mxu0 %v1598
    %v1600 = vand.u32 %v766, 4294901760
    %v1601 = vsub.f32 %v766, %v1600
    %1602 = vmatpush.msra.mxu0 %v1601
    %v1603 = vand.u32 %v967, 4294901760
    %v1604 = vsub.f32 %v967, %v1603
    %1605 = vmatmul.f32.gmra.mxu0 %v1604
    %v1606 = vpop.f32.mrf.mxu0
    %v1607 = vadd.f32 %v1567, %v1606
    %1608 = vdwg.mxu0
    %1609 = vmatpush.msra.mxu0 0.0
    %1610 = vmatpush.msra.mxu0 0.0
    %1611 = vmatpush.msra.mxu0 0.0
    %1612 = vmatpush.msra.mxu0 0.0
    %1613 = vmatpush.msra.mxu0 0.0
    %1614 = vmatpush.msra.mxu0 0.0
    %1615 = vmatpush.msra.mxu0 0.0
    %v1616 = vand.u32 %v962, 4294901760
    %1617 = vmatpush.msra.mxu0 %v1616
    %v1618 = vand.u32 %v934, 4294901760
    %1619 = vmatpush.msra.mxu0 %v1618
    %v1620 = vand.u32 %v906, 4294901760
    %1621 = vmatpush.msra.mxu0 %v1620
    %v1622 = vand.u32 %v878, 4294901760
    %1623 = vmatpush.msra.mxu0 %v1622
    %v1624 = vand.u32 %v737, 4294901760
    %1625 = vmatpush.msra.mxu0 %v1624
    %v1626 = vand.u32 %v850, 4294901760
    %1627 = vmatpush.msra.mxu0 %v1626
    %v1628 = vand.u32 %v822, 4294901760
    %1629 = vmatpush.msra.mxu0 %v1628
    %v1630 = vand.u32 %v794, 4294901760
    %1631 = vmatpush.msra.mxu0 %v1630
    %v1632 = vand.u32 %v766, 4294901760
    %1633 = vmatpush.msra.mxu0 %v1632
    %v1634 = vand.u32 %v967, 4294901760
    %v1635 = vsub.f32 %v967, %v1634
    %v1636 = vand.u32 %v1635, 4294901760
    %1637 = vmatmul.f32.gmra.mxu0 %v1636
    %v1638 = vpop.f32.mrf.mxu0
    %v1639 = vadd.f32 %v1607, %v1638
    %1640 = vdwg.mxu0
    %1641 = vmatpush.msra.mxu0 0.0
    %1642 = vmatpush.msra.mxu0 0.0
    %1643 = vmatpush.msra.mxu0 0.0
    %1644 = vmatpush.msra.mxu0 0.0
    %1645 = vmatpush.msra.mxu0 0.0
    %1646 = vmatpush.msra.mxu0 0.0
    %1647 = vmatpush.msra.mxu0 0.0
    %v1648 = vand.u32 %v962, 4294901760
    %v1649 = vsub.f32 %v962, %v1648
    %v1650 = vand.u32 %v1649, 4294901760
    %1651 = vmatpush.msra.mxu0 %v1650
    %v1652 = vand.u32 %v934, 4294901760
    %v1653 = vsub.f32 %v934, %v1652
    %v1654 = vand.u32 %v1653, 4294901760
    %1655 = vmatpush.msra.mxu0 %v1654
    %v1656 = vand.u32 %v906, 4294901760
    %v1657 = vsub.f32 %v906, %v1656
    %v1658 = vand.u32 %v1657, 4294901760
    %1659 = vmatpush.msra.mxu0 %v1658
    %v1660 = vand.u32 %v878, 4294901760
    %v1661 = vsub.f32 %v878, %v1660
    %v1662 = vand.u32 %v1661, 4294901760
    %1663 = vmatpush.msra.mxu0 %v1662
    %v1664 = vand.u32 %v737, 4294901760
    %v1665 = vsub.f32 %v737, %v1664
    %v1666 = vand.u32 %v1665, 4294901760
    %1667 = vmatpush.msra.mxu0 %v1666
    %v1668 = vand.u32 %v850, 4294901760
    %v1669 = vsub.f32 %v850, %v1668
    %v1670 = vand.u32 %v1669, 4294901760
    %1671 = vmatpush.msra.mxu0 %v1670
    %v1672 = vand.u32 %v822, 4294901760
    %v1673 = vsub.f32 %v822, %v1672
    %v1674 = vand.u32 %v1673, 4294901760
    %1675 = vmatpush.msra.mxu0 %v1674
    %v1676 = vand.u32 %v794, 4294901760
    %v1677 = vsub.f32 %v794, %v1676
    %v1678 = vand.u32 %v1677, 4294901760
    %1679 = vmatpush.msra.mxu0 %v1678
    %v1680 = vand.u32 %v766, 4294901760
    %v1681 = vsub.f32 %v766, %v1680
    %v1682 = vand.u32 %v1681, 4294901760
    %1683 = vmatpush.msra.mxu0 %v1682
    %v1684 = vand.u32 %v967, 4294901760
    %1685 = vmatmul.f32.gmra.mxu0 %v1684
    %v1686 = vpop.f32.mrf.mxu0
    %v1687 = vadd.f32 %v1639, %v1686
    %1688 = vdwg.mxu0
    %1689 = vmatpush.msra.mxu0 0.0
    %1690 = vmatpush.msra.mxu0 0.0
    %1691 = vmatpush.msra.mxu0 0.0
    %1692 = vmatpush.msra.mxu0 0.0
    %1693 = vmatpush.msra.mxu0 0.0
    %1694 = vmatpush.msra.mxu0 0.0
    %1695 = vmatpush.msra.mxu0 0.0
    %v1696 = vand.u32 %v962, 4294901760
    %1697 = vmatpush.msra.mxu0 %v1696
    %v1698 = vand.u32 %v934, 4294901760
    %1699 = vmatpush.msra.mxu0 %v1698
    %v1700 = vand.u32 %v906, 4294901760
    %1701 = vmatpush.msra.mxu0 %v1700
    %v1702 = vand.u32 %v878, 4294901760
    %1703 = vmatpush.msra.mxu0 %v1702
    %v1704 = vand.u32 %v737, 4294901760
    %1705 = vmatpush.msra.mxu0 %v1704
    %v1706 = vand.u32 %v850, 4294901760
    %1707 = vmatpush.msra.mxu0 %v1706
    %v1708 = vand.u32 %v822, 4294901760
    %1709 = vmatpush.msra.mxu0 %v1708
    %v1710 = vand.u32 %v794, 4294901760
    %1711 = vmatpush.msra.mxu0 %v1710
    %v1712 = vand.u32 %v766, 4294901760
    %1713 = vmatpush.msra.mxu0 %v1712
    %v1714 = vand.u32 %v967, 4294901760
    %1715 = vmatmul.f32.gmra.mxu0 %v1714
    %v1716 = vpop.f32.mrf.mxu0
    %v1717 = vadd.f32 %v1687, %v1716
    %1718 = vdwg.mxu0
    %1719 = vmatpush.msra.mxu0 0.0
    %1720 = vmatpush.msra.mxu0 0.0
    %1721 = vmatpush.msra.mxu0 0.0
    %1722 = vmatpush.msra.mxu0 0.0
    %1723 = vmatpush.msra.mxu0 0.0
    %1724 = vmatpush.msra.mxu0 0.0
    %1725 = vmatpush.msra.mxu0 0.0
    %v1726 = vand.u32 %v963, 4294901760
    %1727 = vmatpush.msra.mxu0 %v1726
    %v1728 = vand.u32 %v935, 4294901760
    %1729 = vmatpush.msra.mxu0 %v1728
    %v1730 = vand.u32 %v907, 4294901760
    %1731 = vmatpush.msra.mxu0 %v1730
    %v1732 = vand.u32 %v879, 4294901760
    %1733 = vmatpush.msra.mxu0 %v1732
    %v1734 = vand.u32 %v738, 4294901760
    %1735 = vmatpush.msra.mxu0 %v1734
    %v1736 = vand.u32 %v851, 4294901760
    %1737 = vmatpush.msra.mxu0 %v1736
    %v1738 = vand.u32 %v823, 4294901760
    %1739 = vmatpush.msra.mxu0 %v1738
    %v1740 = vand.u32 %v795, 4294901760
    %1741 = vmatpush.msra.mxu0 %v1740
    %v1742 = vand.u32 %v767, 4294901760
    %1743 = vmatpush.msra.mxu0 %v1742
    %v1744 = vand.u32 %v967, 4294901760
    %v1745 = vsub.f32 %v967, %v1744
    %v1746 = vand.u32 %v1745, 4294901760
    %v1747 = vsub.f32 %v1745, %v1746
    %v1748 = vand.u32 %v1747, 4294901760
    %1749 = vmatmul.f32.gmra.mxu0 %v1748
    %v1750 = vpop.f32.mrf.mxu0
    %v1751 = vadd.f32 0.0, %v1750
    %1752 = vdwg.mxu0
    %1753 = vmatpush.msra.mxu0 0.0
    %1754 = vmatpush.msra.mxu0 0.0
    %1755 = vmatpush.msra.mxu0 0.0
    %1756 = vmatpush.msra.mxu0 0.0
    %1757 = vmatpush.msra.mxu0 0.0
    %1758 = vmatpush.msra.mxu0 0.0
    %1759 = vmatpush.msra.mxu0 0.0
    %v1760 = vand.u32 %v963, 4294901760
    %v1761 = vsub.f32 %v963, %v1760
    %v1762 = vand.u32 %v1761, 4294901760
    %v1763 = vsub.f32 %v1761, %v1762
    %v1764 = vand.u32 %v1763, 4294901760
    %1765 = vmatpush.msra.mxu0 %v1764
    %v1766 = vand.u32 %v935, 4294901760
    %v1767 = vsub.f32 %v935, %v1766
    %v1768 = vand.u32 %v1767, 4294901760
    %v1769 = vsub.f32 %v1767, %v1768
    %v1770 = vand.u32 %v1769, 4294901760
    %1771 = vmatpush.msra.mxu0 %v1770
    %v1772 = vand.u32 %v907, 4294901760
    %v1773 = vsub.f32 %v907, %v1772
    %v1774 = vand.u32 %v1773, 4294901760
    %v1775 = vsub.f32 %v1773, %v1774
    %v1776 = vand.u32 %v1775, 4294901760
    %1777 = vmatpush.msra.mxu0 %v1776
    %v1778 = vand.u32 %v879, 4294901760
    %v1779 = vsub.f32 %v879, %v1778
    %v1780 = vand.u32 %v1779, 4294901760
    %v1781 = vsub.f32 %v1779, %v1780
    %v1782 = vand.u32 %v1781, 4294901760
    %1783 = vmatpush.msra.mxu0 %v1782
    %v1784 = vand.u32 %v738, 4294901760
    %v1785 = vsub.f32 %v738, %v1784
    %v1786 = vand.u32 %v1785, 4294901760
    %v1787 = vsub.f32 %v1785, %v1786
    %v1788 = vand.u32 %v1787, 4294901760
    %1789 = vmatpush.msra.mxu0 %v1788
    %v1790 = vand.u32 %v851, 4294901760
    %v1791 = vsub.f32 %v851, %v1790
    %v1792 = vand.u32 %v1791, 4294901760
    %v1793 = vsub.f32 %v1791, %v1792
    %v1794 = vand.u32 %v1793, 4294901760
    %1795 = vmatpush.msra.mxu0 %v1794
    %v1796 = vand.u32 %v823, 4294901760
    %v1797 = vsub.f32 %v823, %v1796
    %v1798 = vand.u32 %v1797, 4294901760
    %v1799 = vsub.f32 %v1797, %v1798
    %v1800 = vand.u32 %v1799, 4294901760
    %1801 = vmatpush.msra.mxu0 %v1800
    %v1802 = vand.u32 %v795, 4294901760
    %v1803 = vsub.f32 %v795, %v1802
    %v1804 = vand.u32 %v1803, 4294901760
    %v1805 = vsub.f32 %v1803, %v1804
    %v1806 = vand.u32 %v1805, 4294901760
    %1807 = vmatpush.msra.mxu0 %v1806
    %v1808 = vand.u32 %v767, 4294901760
    %v1809 = vsub.f32 %v767, %v1808
    %v1810 = vand.u32 %v1809, 4294901760
    %v1811 = vsub.f32 %v1809, %v1810
    %v1812 = vand.u32 %v1811, 4294901760
    %1813 = vmatpush.msra.mxu0 %v1812
    %v1814 = vand.u32 %v967, 4294901760
    %1815 = vmatmul.f32.gmra.mxu0 %v1814
    %v1816 = vpop.f32.mrf.mxu0
    %v1817 = vadd.f32 %v1751, %v1816
    %1818 = vdwg.mxu0
    %1819 = vmatpush.msra.mxu0 0.0
    %1820 = vmatpush.msra.mxu0 0.0
    %1821 = vmatpush.msra.mxu0 0.0
    %1822 = vmatpush.msra.mxu0 0.0
    %1823 = vmatpush.msra.mxu0 0.0
    %1824 = vmatpush.msra.mxu0 0.0
    %1825 = vmatpush.msra.mxu0 0.0
    %v1826 = vand.u32 %v963, 4294901760
    %v1827 = vsub.f32 %v963, %v1826
    %1828 = vmatpush.msra.mxu0 %v1827
    %v1829 = vand.u32 %v935, 4294901760
    %v1830 = vsub.f32 %v935, %v1829
    %1831 = vmatpush.msra.mxu0 %v1830
    %v1832 = vand.u32 %v907, 4294901760
    %v1833 = vsub.f32 %v907, %v1832
    %1834 = vmatpush.msra.mxu0 %v1833
    %v1835 = vand.u32 %v879, 4294901760
    %v1836 = vsub.f32 %v879, %v1835
    %1837 = vmatpush.msra.mxu0 %v1836
    %v1838 = vand.u32 %v738, 4294901760
    %v1839 = vsub.f32 %v738, %v1838
    %1840 = vmatpush.msra.mxu0 %v1839
    %v1841 = vand.u32 %v851, 4294901760
    %v1842 = vsub.f32 %v851, %v1841
    %1843 = vmatpush.msra.mxu0 %v1842
    %v1844 = vand.u32 %v823, 4294901760
    %v1845 = vsub.f32 %v823, %v1844
    %1846 = vmatpush.msra.mxu0 %v1845
    %v1847 = vand.u32 %v795, 4294901760
    %v1848 = vsub.f32 %v795, %v1847
    %1849 = vmatpush.msra.mxu0 %v1848
    %v1850 = vand.u32 %v767, 4294901760
    %v1851 = vsub.f32 %v767, %v1850
    %1852 = vmatpush.msra.mxu0 %v1851
    %v1853 = vand.u32 %v967, 4294901760
    %v1854 = vsub.f32 %v967, %v1853
    %1855 = vmatmul.f32.gmra.mxu0 %v1854
    %v1856 = vpop.f32.mrf.mxu0
    %v1857 = vadd.f32 %v1817, %v1856
    %1858 = vdwg.mxu0
    %1859 = vmatpush.msra.mxu0 0.0
    %1860 = vmatpush.msra.mxu0 0.0
    %1861 = vmatpush.msra.mxu0 0.0
    %1862 = vmatpush.msra.mxu0 0.0
    %1863 = vmatpush.msra.mxu0 0.0
    %1864 = vmatpush.msra.mxu0 0.0
    %1865 = vmatpush.msra.mxu0 0.0
    %v1866 = vand.u32 %v963, 4294901760
    %1867 = vmatpush.msra.mxu0 %v1866
    %v1868 = vand.u32 %v935, 4294901760
    %1869 = vmatpush.msra.mxu0 %v1868
    %v1870 = vand.u32 %v907, 4294901760
    %1871 = vmatpush.msra.mxu0 %v1870
    %v1872 = vand.u32 %v879, 4294901760
    %1873 = vmatpush.msra.mxu0 %v1872
    %v1874 = vand.u32 %v738, 4294901760
    %1875 = vmatpush.msra.mxu0 %v1874
    %v1876 = vand.u32 %v851, 4294901760
    %1877 = vmatpush.msra.mxu0 %v1876
    %v1878 = vand.u32 %v823, 4294901760
    %1879 = vmatpush.msra.mxu0 %v1878
    %v1880 = vand.u32 %v795, 4294901760
    %1881 = vmatpush.msra.mxu0 %v1880
    %v1882 = vand.u32 %v767, 4294901760
    %1883 = vmatpush.msra.mxu0 %v1882
    %v1884 = vand.u32 %v967, 4294901760
    %v1885 = vsub.f32 %v967, %v1884
    %v1886 = vand.u32 %v1885, 4294901760
    %1887 = vmatmul.f32.gmra.mxu0 %v1886
    %v1888 = vpop.f32.mrf.mxu0
    %v1889 = vadd.f32 %v1857, %v1888
    %1890 = vdwg.mxu0
    %1891 = vmatpush.msra.mxu0 0.0
    %1892 = vmatpush.msra.mxu0 0.0
    %1893 = vmatpush.msra.mxu0 0.0
    %1894 = vmatpush.msra.mxu0 0.0
    %1895 = vmatpush.msra.mxu0 0.0
    %1896 = vmatpush.msra.mxu0 0.0
    %1897 = vmatpush.msra.mxu0 0.0
    %v1898 = vand.u32 %v963, 4294901760
    %v1899 = vsub.f32 %v963, %v1898
    %v1900 = vand.u32 %v1899, 4294901760
    %1901 = vmatpush.msra.mxu0 %v1900
    %v1902 = vand.u32 %v935, 4294901760
    %v1903 = vsub.f32 %v935, %v1902
    %v1904 = vand.u32 %v1903, 4294901760
    %1905 = vmatpush.msra.mxu0 %v1904
    %v1906 = vand.u32 %v907, 4294901760
    %v1907 = vsub.f32 %v907, %v1906
    %v1908 = vand.u32 %v1907, 4294901760
    %1909 = vmatpush.msra.mxu0 %v1908
    %v1910 = vand.u32 %v879, 4294901760
    %v1911 = vsub.f32 %v879, %v1910
    %v1912 = vand.u32 %v1911, 4294901760
    %1913 = vmatpush.msra.mxu0 %v1912
    %v1914 = vand.u32 %v738, 4294901760
    %v1915 = vsub.f32 %v738, %v1914
    %v1916 = vand.u32 %v1915, 4294901760
    %1917 = vmatpush.msra.mxu0 %v1916
    %v1918 = vand.u32 %v851, 4294901760
    %v1919 = vsub.f32 %v851, %v1918
    %v1920 = vand.u32 %v1919, 4294901760
    %1921 = vmatpush.msra.mxu0 %v1920
    %v1922 = vand.u32 %v823, 4294901760
    %v1923 = vsub.f32 %v823, %v1922
    %v1924 = vand.u32 %v1923, 4294901760
    %1925 = vmatpush.msra.mxu0 %v1924
    %v1926 = vand.u32 %v795, 4294901760
    %v1927 = vsub.f32 %v795, %v1926
    %v1928 = vand.u32 %v1927, 4294901760
    %1929 = vmatpush.msra.mxu0 %v1928
    %v1930 = vand.u32 %v767, 4294901760
    %v1931 = vsub.f32 %v767, %v1930
    %v1932 = vand.u32 %v1931, 4294901760
    %1933 = vmatpush.msra.mxu0 %v1932
    %v1934 = vand.u32 %v967, 4294901760
    %1935 = vmatmul.f32.gmra.mxu0 %v1934
    %v1936 = vpop.f32.mrf.mxu0
    %v1937 = vadd.f32 %v1889, %v1936
    %1938 = vdwg.mxu0
    %1939 = vmatpush.msra.mxu0 0.0
    %1940 = vmatpush.msra.mxu0 0.0
    %1941 = vmatpush.msra.mxu0 0.0
    %1942 = vmatpush.msra.mxu0 0.0
    %1943 = vmatpush.msra.mxu0 0.0
    %1944 = vmatpush.msra.mxu0 0.0
    %1945 = vmatpush.msra.mxu0 0.0
    %v1946 = vand.u32 %v963, 4294901760
    %1947 = vmatpush.msra.mxu0 %v1946
    %v1948 = vand.u32 %v935, 4294901760
    %1949 = vmatpush.msra.mxu0 %v1948
    %v1950 = vand.u32 %v907, 4294901760
    %1951 = vmatpush.msra.mxu0 %v1950
    %v1952 = vand.u32 %v879, 4294901760
    %1953 = vmatpush.msra.mxu0 %v1952
    %v1954 = vand.u32 %v738, 4294901760
    %1955 = vmatpush.msra.mxu0 %v1954
    %v1956 = vand.u32 %v851, 4294901760
    %1957 = vmatpush.msra.mxu0 %v1956
    %v1958 = vand.u32 %v823, 4294901760
    %1959 = vmatpush.msra.mxu0 %v1958
    %v1960 = vand.u32 %v795, 4294901760
    %1961 = vmatpush.msra.mxu0 %v1960
    %v1962 = vand.u32 %v767, 4294901760
    %1963 = vmatpush.msra.mxu0 %v1962
    %v1964 = vand.u32 %v967, 4294901760
    %1965 = vmatmul.f32.gmra.mxu0 %v1964
    %v1966 = vpop.f32.mrf.mxu0
    %v1967 = vadd.f32 %v1937, %v1966
    %1968 = vdwg.mxu0
    %v1969 = vld [vmem:[%s6] sm:$0xff]
    %v1970 = vld [vmem:[%s7] sm:$0xff]
    %v1971 = vadd.f32 %v1217, %v1467
    %v1972 = vadd.f32 %v1971, %v1717
    %v1973 = vadd.f32 %v1972, %v1967
    %1974 = vadd.xlane.f32.xlu0 %v1973
    %v1975 = vpop.xlane.xlu0 %1974
    %v1976 = vmul.f32 %v1975, 0.001953125
    %v1977 = vsub.f32 %v1217, %v1976
    %v1978 = vsub.f32 %v1467, %v1976
    %v1979 = vsub.f32 %v1717, %v1976
    %v1980 = vsub.f32 %v1967, %v1976
    %v1981 = vmul.f32 %v1977, %v1977
    %v1982 = vmul.f32 %v1978, %v1978
    %v1983 = vmul.f32 %v1979, %v1979
    %v1984 = vmul.f32 %v1980, %v1980
    %v1985 = vadd.f32 %v1981, %v1982
    %v1986 = vadd.f32 %v1985, %v1983
    %v1987 = vadd.f32 %v1986, %v1984
    %1988 = vadd.xlane.f32.xlu0 %v1987
    %v1989 = vpop.xlane.xlu0 %1988
    %v1990 = vmul.f32 %v1989, 0.001953125
    %v1991 = vadd.f32 %v1990, 1e-05
    %v1992 = vrsqrt.pop %v1991
    %v1993 = vmul.f32 %v1992, %v1991
    %v1994 = vmul.f32 %v1993, %v1992
    %v1995 = vmul.f32 0.5, %v1994
    %v1996 = vsub.f32 1.5, %v1995
    %v1997 = vmul.f32 %v1992, %v1996
    %vm1998 = vweird.f32 %v1991
    %vm1999 = vweird.f32 %v1992
    %vm2000 = vmor %vm1998, %vm1999
    %v2001 = vsel %vm2000, %v1992, %v1997
    %v2002 = vmul.f32 %v1977, %v2001
    %v2003 = vmul.f32 %v1978, %v2001
    %v2004 = vmul.f32 %v1979, %v2001
    %v2005 = vmul.f32 %v1980, %v2001
    %2007 = vset.pattern.permute.xlu0 0
    %2008 = vperm.xlu0 %2007, %v1969
    %v2009 = vpop.permute.xlu0 %2008
    %v2011 = vmul.f32 %v2002, %v2009
    %v2012 = vmul.f32 %v2003, %v2009
    %v2013 = vmul.f32 %v2004, %v2009
    %v2014 = vmul.f32 %v2005, %v2009
    %2016 = vset.pattern.permute.xlu0 0
    %2017 = vperm.xlu0 %2016, %v1970
    %v2018 = vpop.permute.xlu0 %2017
    %v2020 = vadd.f32 %v2011, %v2018
    %v2021 = vadd.f32 %v2012, %v2018
    %v2022 = vadd.f32 %v2013, %v2018
    %v2023 = vadd.f32 %v2014, %v2018
    %v2024 = vmax.f32 %v2020, 0.0
    %v2025 = vmax.f32 %v2021, 0.0
    %v2026 = vmax.f32 %v2022, 0.0
    %v2027 = vmax.f32 %v2023, 0.0
    %v2028 = vld [vmem:[%s8] sm:$0xf]
    %vm2029 = vcmask 64512
    %v2031 = vsel %vm2029, %v2028, 0
    %2033 = vmatpush.msra.mxu0 0.0
    %2034 = vmatpush.msra.mxu0 0.0
    %2035 = vmatpush.msra.mxu0 0.0
    %2036 = vmatpush.msra.mxu0 0.0
    %2037 = vmatpush.msra.mxu0 0.0
    %2038 = vmatpush.msra.mxu0 0.0
    %2039 = vmatpush.msra.mxu0 0.0
    %2040 = vmatpush.msra.mxu0 0.0
    %2041 = vmatpush.msra.mxu0 0.0
    %2042 = vmatpush.msra.mxu0 0.0
    %2043 = vmatpush.msra.mxu0 0.0
    %2044 = vmatpush.msra.mxu0 0.0
    %2045 = vmatpush.msra.mxu0 0.0
    %2046 = vmatpush.msra.mxu0 0.0
    %2047 = vmatpush.msra.mxu0 0.0
    %v2048 = vand.u32 %v2024, 4294901760
    %2049 = vmatpush.msra.mxu0 %v2048
    %v2050 = vand.u32 %v2031, 4294901760
    %v2051 = vsub.f32 %v2031, %v2050
    %v2052 = vand.u32 %v2051, 4294901760
    %v2053 = vsub.f32 %v2051, %v2052
    %v2054 = vand.u32 %v2053, 4294901760
    %2055 = vmatmul.f32.gmra.mxu0 %v2054
    %v2056 = vpop.f32.mrf.mxu0
    %v2057 = vadd.f32 0.0, %v2056
    %2058 = vdwg.mxu0
    %2059 = vmatpush.msra.mxu0 0.0
    %2060 = vmatpush.msra.mxu0 0.0
    %2061 = vmatpush.msra.mxu0 0.0
    %2062 = vmatpush.msra.mxu0 0.0
    %2063 = vmatpush.msra.mxu0 0.0
    %2064 = vmatpush.msra.mxu0 0.0
    %2065 = vmatpush.msra.mxu0 0.0
    %2066 = vmatpush.msra.mxu0 0.0
    %2067 = vmatpush.msra.mxu0 0.0
    %2068 = vmatpush.msra.mxu0 0.0
    %2069 = vmatpush.msra.mxu0 0.0
    %2070 = vmatpush.msra.mxu0 0.0
    %2071 = vmatpush.msra.mxu0 0.0
    %2072 = vmatpush.msra.mxu0 0.0
    %2073 = vmatpush.msra.mxu0 0.0
    %v2074 = vand.u32 %v2024, 4294901760
    %v2075 = vsub.f32 %v2024, %v2074
    %v2076 = vand.u32 %v2075, 4294901760
    %v2077 = vsub.f32 %v2075, %v2076
    %v2078 = vand.u32 %v2077, 4294901760
    %2079 = vmatpush.msra.mxu0 %v2078
    %v2080 = vand.u32 %v2031, 4294901760
    %2081 = vmatmul.f32.gmra.mxu0 %v2080
    %v2082 = vpop.f32.mrf.mxu0
    %v2083 = vadd.f32 %v2057, %v2082
    %2084 = vdwg.mxu0
    %2085 = vmatpush.msra.mxu0 0.0
    %2086 = vmatpush.msra.mxu0 0.0
    %2087 = vmatpush.msra.mxu0 0.0
    %2088 = vmatpush.msra.mxu0 0.0
    %2089 = vmatpush.msra.mxu0 0.0
    %2090 = vmatpush.msra.mxu0 0.0
    %2091 = vmatpush.msra.mxu0 0.0
    %2092 = vmatpush.msra.mxu0 0.0
    %2093 = vmatpush.msra.mxu0 0.0
    %2094 = vmatpush.msra.mxu0 0.0
    %2095 = vmatpush.msra.mxu0 0.0
    %2096 = vmatpush.msra.mxu0 0.0
    %2097 = vmatpush.msra.mxu0 0.0
    %2098 = vmatpush.msra.mxu0 0.0
    %2099 = vmatpush.msra.mxu0 0.0
    %v2100 = vand.u32 %v2024, 4294901760
    %v2101 = vsub.f32 %v2024, %v2100
    %2102 = vmatpush.msra.mxu0 %v2101
    %v2103 = vand.u32 %v2031, 4294901760
    %v2104 = vsub.f32 %v2031, %v2103
    %2105 = vmatmul.f32.gmra.mxu0 %v2104
    %v2106 = vpop.f32.mrf.mxu0
    %v2107 = vadd.f32 %v2083, %v2106
    %2108 = vdwg.mxu0
    %2109 = vmatpush.msra.mxu0 0.0
    %2110 = vmatpush.msra.mxu0 0.0
    %2111 = vmatpush.msra.mxu0 0.0
    %2112 = vmatpush.msra.mxu0 0.0
    %2113 = vmatpush.msra.mxu0 0.0
    %2114 = vmatpush.msra.mxu0 0.0
    %2115 = vmatpush.msra.mxu0 0.0
    %2116 = vmatpush.msra.mxu0 0.0
    %2117 = vmatpush.msra.mxu0 0.0
    %2118 = vmatpush.msra.mxu0 0.0
    %2119 = vmatpush.msra.mxu0 0.0
    %2120 = vmatpush.msra.mxu0 0.0
    %2121 = vmatpush.msra.mxu0 0.0
    %2122 = vmatpush.msra.mxu0 0.0
    %2123 = vmatpush.msra.mxu0 0.0
    %v2124 = vand.u32 %v2024, 4294901760
    %2125 = vmatpush.msra.mxu0 %v2124
    %v2126 = vand.u32 %v2031, 4294901760
    %v2127 = vsub.f32 %v2031, %v2126
    %v2128 = vand.u32 %v2127, 4294901760
    %2129 = vmatmul.f32.gmra.mxu0 %v2128
    %v2130 = vpop.f32.mrf.mxu0
    %v2131 = vadd.f32 %v2107, %v2130
    %2132 = vdwg.mxu0
    %2133 = vmatpush.msra.mxu0 0.0
    %2134 = vmatpush.msra.mxu0 0.0
    %2135 = vmatpush.msra.mxu0 0.0
    %2136 = vmatpush.msra.mxu0 0.0
    %2137 = vmatpush.msra.mxu0 0.0
    %2138 = vmatpush.msra.mxu0 0.0
    %2139 = vmatpush.msra.mxu0 0.0
    %2140 = vmatpush.msra.mxu0 0.0
    %2141 = vmatpush.msra.mxu0 0.0
    %2142 = vmatpush.msra.mxu0 0.0
    %2143 = vmatpush.msra.mxu0 0.0
    %2144 = vmatpush.msra.mxu0 0.0
    %2145 = vmatpush.msra.mxu0 0.0
    %2146 = vmatpush.msra.mxu0 0.0
    %2147 = vmatpush.msra.mxu0 0.0
    %v2148 = vand.u32 %v2024, 4294901760
    %v2149 = vsub.f32 %v2024, %v2148
    %v2150 = vand.u32 %v2149, 4294901760
    %2151 = vmatpush.msra.mxu0 %v2150
    %v2152 = vand.u32 %v2031, 4294901760
    %2153 = vmatmul.f32.gmra.mxu0 %v2152
    %v2154 = vpop.f32.mrf.mxu0
    %v2155 = vadd.f32 %v2131, %v2154
    %2156 = vdwg.mxu0
    %2157 = vmatpush.msra.mxu0 0.0
    %2158 = vmatpush.msra.mxu0 0.0
    %2159 = vmatpush.msra.mxu0 0.0
    %2160 = vmatpush.msra.mxu0 0.0
    %2161 = vmatpush.msra.mxu0 0.0
    %2162 = vmatpush.msra.mxu0 0.0
    %2163 = vmatpush.msra.mxu0 0.0
    %2164 = vmatpush.msra.mxu0 0.0
    %2165 = vmatpush.msra.mxu0 0.0
    %2166 = vmatpush.msra.mxu0 0.0
    %2167 = vmatpush.msra.mxu0 0.0
    %2168 = vmatpush.msra.mxu0 0.0
    %2169 = vmatpush.msra.mxu0 0.0
    %2170 = vmatpush.msra.mxu0 0.0
    %2171 = vmatpush.msra.mxu0 0.0
    %v2172 = vand.u32 %v2024, 4294901760
    %2173 = vmatpush.msra.mxu0 %v2172
    %v2174 = vand.u32 %v2031, 4294901760
    %2175 = vmatmul.f32.gmra.mxu0 %v2174
    %v2176 = vpop.f32.mrf.mxu0
    %v2177 = vadd.f32 %v2155, %v2176
    %2178 = vdwg.mxu0
    %2179 = vmatpush.msra.mxu0 0.0
    %2180 = vmatpush.msra.mxu0 0.0
    %2181 = vmatpush.msra.mxu0 0.0
    %2182 = vmatpush.msra.mxu0 0.0
    %2183 = vmatpush.msra.mxu0 0.0
    %2184 = vmatpush.msra.mxu0 0.0
    %2185 = vmatpush.msra.mxu0 0.0
    %2186 = vmatpush.msra.mxu0 0.0
    %2187 = vmatpush.msra.mxu0 0.0
    %2188 = vmatpush.msra.mxu0 0.0
    %2189 = vmatpush.msra.mxu0 0.0
    %2190 = vmatpush.msra.mxu0 0.0
    %2191 = vmatpush.msra.mxu0 0.0
    %2192 = vmatpush.msra.mxu0 0.0
    %2193 = vmatpush.msra.mxu0 0.0
    %v2194 = vand.u32 %v2025, 4294901760
    %2195 = vmatpush.msra.mxu0 %v2194
    %v2196 = vand.u32 %v2031, 4294901760
    %v2197 = vsub.f32 %v2031, %v2196
    %v2198 = vand.u32 %v2197, 4294901760
    %v2199 = vsub.f32 %v2197, %v2198
    %v2200 = vand.u32 %v2199, 4294901760
    %2201 = vmatmul.f32.gmra.mxu0 %v2200
    %v2202 = vpop.f32.mrf.mxu0
    %v2203 = vadd.f32 0.0, %v2202
    %2204 = vdwg.mxu0
    %2205 = vmatpush.msra.mxu0 0.0
    %2206 = vmatpush.msra.mxu0 0.0
    %2207 = vmatpush.msra.mxu0 0.0
    %2208 = vmatpush.msra.mxu0 0.0
    %2209 = vmatpush.msra.mxu0 0.0
    %2210 = vmatpush.msra.mxu0 0.0
    %2211 = vmatpush.msra.mxu0 0.0
    %2212 = vmatpush.msra.mxu0 0.0
    %2213 = vmatpush.msra.mxu0 0.0
    %2214 = vmatpush.msra.mxu0 0.0
    %2215 = vmatpush.msra.mxu0 0.0
    %2216 = vmatpush.msra.mxu0 0.0
    %2217 = vmatpush.msra.mxu0 0.0
    %2218 = vmatpush.msra.mxu0 0.0
    %2219 = vmatpush.msra.mxu0 0.0
    %v2220 = vand.u32 %v2025, 4294901760
    %v2221 = vsub.f32 %v2025, %v2220
    %v2222 = vand.u32 %v2221, 4294901760
    %v2223 = vsub.f32 %v2221, %v2222
    %v2224 = vand.u32 %v2223, 4294901760
    %2225 = vmatpush.msra.mxu0 %v2224
    %v2226 = vand.u32 %v2031, 4294901760
    %2227 = vmatmul.f32.gmra.mxu0 %v2226
    %v2228 = vpop.f32.mrf.mxu0
    %v2229 = vadd.f32 %v2203, %v2228
    %2230 = vdwg.mxu0
    %2231 = vmatpush.msra.mxu0 0.0
    %2232 = vmatpush.msra.mxu0 0.0
    %2233 = vmatpush.msra.mxu0 0.0
    %2234 = vmatpush.msra.mxu0 0.0
    %2235 = vmatpush.msra.mxu0 0.0
    %2236 = vmatpush.msra.mxu0 0.0
    %2237 = vmatpush.msra.mxu0 0.0
    %2238 = vmatpush.msra.mxu0 0.0
    %2239 = vmatpush.msra.mxu0 0.0
    %2240 = vmatpush.msra.mxu0 0.0
    %2241 = vmatpush.msra.mxu0 0.0
    %2242 = vmatpush.msra.mxu0 0.0
    %2243 = vmatpush.msra.mxu0 0.0
    %2244 = vmatpush.msra.mxu0 0.0
    %2245 = vmatpush.msra.mxu0 0.0
    %v2246 = vand.u32 %v2025, 4294901760
    %v2247 = vsub.f32 %v2025, %v2246
    %2248 = vmatpush.msra.mxu0 %v2247
    %v2249 = vand.u32 %v2031, 4294901760
    %v2250 = vsub.f32 %v2031, %v2249
    %2251 = vmatmul.f32.gmra.mxu0 %v2250
    %v2252 = vpop.f32.mrf.mxu0
    %v2253 = vadd.f32 %v2229, %v2252
    %2254 = vdwg.mxu0
    %2255 = vmatpush.msra.mxu0 0.0
    %2256 = vmatpush.msra.mxu0 0.0
    %2257 = vmatpush.msra.mxu0 0.0
    %2258 = vmatpush.msra.mxu0 0.0
    %2259 = vmatpush.msra.mxu0 0.0
    %2260 = vmatpush.msra.mxu0 0.0
    %2261 = vmatpush.msra.mxu0 0.0
    %2262 = vmatpush.msra.mxu0 0.0
    %2263 = vmatpush.msra.mxu0 0.0
    %2264 = vmatpush.msra.mxu0 0.0
    %2265 = vmatpush.msra.mxu0 0.0
    %2266 = vmatpush.msra.mxu0 0.0
    %2267 = vmatpush.msra.mxu0 0.0
    %2268 = vmatpush.msra.mxu0 0.0
    %2269 = vmatpush.msra.mxu0 0.0
    %v2270 = vand.u32 %v2025, 4294901760
    %2271 = vmatpush.msra.mxu0 %v2270
    %v2272 = vand.u32 %v2031, 4294901760
    %v2273 = vsub.f32 %v2031, %v2272
    %v2274 = vand.u32 %v2273, 4294901760
    %2275 = vmatmul.f32.gmra.mxu0 %v2274
    %v2276 = vpop.f32.mrf.mxu0
    %v2277 = vadd.f32 %v2253, %v2276
    %2278 = vdwg.mxu0
    %2279 = vmatpush.msra.mxu0 0.0
    %2280 = vmatpush.msra.mxu0 0.0
    %2281 = vmatpush.msra.mxu0 0.0
    %2282 = vmatpush.msra.mxu0 0.0
    %2283 = vmatpush.msra.mxu0 0.0
    %2284 = vmatpush.msra.mxu0 0.0
    %2285 = vmatpush.msra.mxu0 0.0
    %2286 = vmatpush.msra.mxu0 0.0
    %2287 = vmatpush.msra.mxu0 0.0
    %2288 = vmatpush.msra.mxu0 0.0
    %2289 = vmatpush.msra.mxu0 0.0
    %2290 = vmatpush.msra.mxu0 0.0
    %2291 = vmatpush.msra.mxu0 0.0
    %2292 = vmatpush.msra.mxu0 0.0
    %2293 = vmatpush.msra.mxu0 0.0
    %v2294 = vand.u32 %v2025, 4294901760
    %v2295 = vsub.f32 %v2025, %v2294
    %v2296 = vand.u32 %v2295, 4294901760
    %2297 = vmatpush.msra.mxu0 %v2296
    %v2298 = vand.u32 %v2031, 4294901760
    %2299 = vmatmul.f32.gmra.mxu0 %v2298
    %v2300 = vpop.f32.mrf.mxu0
    %v2301 = vadd.f32 %v2277, %v2300
    %2302 = vdwg.mxu0
    %2303 = vmatpush.msra.mxu0 0.0
    %2304 = vmatpush.msra.mxu0 0.0
    %2305 = vmatpush.msra.mxu0 0.0
    %2306 = vmatpush.msra.mxu0 0.0
    %2307 = vmatpush.msra.mxu0 0.0
    %2308 = vmatpush.msra.mxu0 0.0
    %2309 = vmatpush.msra.mxu0 0.0
    %2310 = vmatpush.msra.mxu0 0.0
    %2311 = vmatpush.msra.mxu0 0.0
    %2312 = vmatpush.msra.mxu0 0.0
    %2313 = vmatpush.msra.mxu0 0.0
    %2314 = vmatpush.msra.mxu0 0.0
    %2315 = vmatpush.msra.mxu0 0.0
    %2316 = vmatpush.msra.mxu0 0.0
    %2317 = vmatpush.msra.mxu0 0.0
    %v2318 = vand.u32 %v2025, 4294901760
    %2319 = vmatpush.msra.mxu0 %v2318
    %v2320 = vand.u32 %v2031, 4294901760
    %2321 = vmatmul.f32.gmra.mxu0 %v2320
    %v2322 = vpop.f32.mrf.mxu0
    %v2323 = vadd.f32 %v2301, %v2322
    %2324 = vdwg.mxu0
    %2325 = vmatpush.msra.mxu0 0.0
    %2326 = vmatpush.msra.mxu0 0.0
    %2327 = vmatpush.msra.mxu0 0.0
    %2328 = vmatpush.msra.mxu0 0.0
    %2329 = vmatpush.msra.mxu0 0.0
    %2330 = vmatpush.msra.mxu0 0.0
    %2331 = vmatpush.msra.mxu0 0.0
    %2332 = vmatpush.msra.mxu0 0.0
    %2333 = vmatpush.msra.mxu0 0.0
    %2334 = vmatpush.msra.mxu0 0.0
    %2335 = vmatpush.msra.mxu0 0.0
    %2336 = vmatpush.msra.mxu0 0.0
    %2337 = vmatpush.msra.mxu0 0.0
    %2338 = vmatpush.msra.mxu0 0.0
    %2339 = vmatpush.msra.mxu0 0.0
    %v2340 = vand.u32 %v2026, 4294901760
    %2341 = vmatpush.msra.mxu0 %v2340
    %v2342 = vand.u32 %v2031, 4294901760
    %v2343 = vsub.f32 %v2031, %v2342
    %v2344 = vand.u32 %v2343, 4294901760
    %v2345 = vsub.f32 %v2343, %v2344
    %v2346 = vand.u32 %v2345, 4294901760
    %2347 = vmatmul.f32.gmra.mxu0 %v2346
    %v2348 = vpop.f32.mrf.mxu0
    %v2349 = vadd.f32 0.0, %v2348
    %2350 = vdwg.mxu0
    %2351 = vmatpush.msra.mxu0 0.0
    %2352 = vmatpush.msra.mxu0 0.0
    %2353 = vmatpush.msra.mxu0 0.0
    %2354 = vmatpush.msra.mxu0 0.0
    %2355 = vmatpush.msra.mxu0 0.0
    %2356 = vmatpush.msra.mxu0 0.0
    %2357 = vmatpush.msra.mxu0 0.0
    %2358 = vmatpush.msra.mxu0 0.0
    %2359 = vmatpush.msra.mxu0 0.0
    %2360 = vmatpush.msra.mxu0 0.0
    %2361 = vmatpush.msra.mxu0 0.0
    %2362 = vmatpush.msra.mxu0 0.0
    %2363 = vmatpush.msra.mxu0 0.0
    %2364 = vmatpush.msra.mxu0 0.0
    %2365 = vmatpush.msra.mxu0 0.0
    %v2366 = vand.u32 %v2026, 4294901760
    %v2367 = vsub.f32 %v2026, %v2366
    %v2368 = vand.u32 %v2367, 4294901760
    %v2369 = vsub.f32 %v2367, %v2368
    %v2370 = vand.u32 %v2369, 4294901760
    %2371 = vmatpush.msra.mxu0 %v2370
    %v2372 = vand.u32 %v2031, 4294901760
    %2373 = vmatmul.f32.gmra.mxu0 %v2372
    %v2374 = vpop.f32.mrf.mxu0
    %v2375 = vadd.f32 %v2349, %v2374
    %2376 = vdwg.mxu0
    %2377 = vmatpush.msra.mxu0 0.0
    %2378 = vmatpush.msra.mxu0 0.0
    %2379 = vmatpush.msra.mxu0 0.0
    %2380 = vmatpush.msra.mxu0 0.0
    %2381 = vmatpush.msra.mxu0 0.0
    %2382 = vmatpush.msra.mxu0 0.0
    %2383 = vmatpush.msra.mxu0 0.0
    %2384 = vmatpush.msra.mxu0 0.0
    %2385 = vmatpush.msra.mxu0 0.0
    %2386 = vmatpush.msra.mxu0 0.0
    %2387 = vmatpush.msra.mxu0 0.0
    %2388 = vmatpush.msra.mxu0 0.0
    %2389 = vmatpush.msra.mxu0 0.0
    %2390 = vmatpush.msra.mxu0 0.0
    %2391 = vmatpush.msra.mxu0 0.0
    %v2392 = vand.u32 %v2026, 4294901760
    %v2393 = vsub.f32 %v2026, %v2392
    %2394 = vmatpush.msra.mxu0 %v2393
    %v2395 = vand.u32 %v2031, 4294901760
    %v2396 = vsub.f32 %v2031, %v2395
    %2397 = vmatmul.f32.gmra.mxu0 %v2396
    %v2398 = vpop.f32.mrf.mxu0
    %v2399 = vadd.f32 %v2375, %v2398
    %2400 = vdwg.mxu0
    %2401 = vmatpush.msra.mxu0 0.0
    %2402 = vmatpush.msra.mxu0 0.0
    %2403 = vmatpush.msra.mxu0 0.0
    %2404 = vmatpush.msra.mxu0 0.0
    %2405 = vmatpush.msra.mxu0 0.0
    %2406 = vmatpush.msra.mxu0 0.0
    %2407 = vmatpush.msra.mxu0 0.0
    %2408 = vmatpush.msra.mxu0 0.0
    %2409 = vmatpush.msra.mxu0 0.0
    %2410 = vmatpush.msra.mxu0 0.0
    %2411 = vmatpush.msra.mxu0 0.0
    %2412 = vmatpush.msra.mxu0 0.0
    %2413 = vmatpush.msra.mxu0 0.0
    %2414 = vmatpush.msra.mxu0 0.0
    %2415 = vmatpush.msra.mxu0 0.0
    %v2416 = vand.u32 %v2026, 4294901760
    %2417 = vmatpush.msra.mxu0 %v2416
    %v2418 = vand.u32 %v2031, 4294901760
    %v2419 = vsub.f32 %v2031, %v2418
    %v2420 = vand.u32 %v2419, 4294901760
    %2421 = vmatmul.f32.gmra.mxu0 %v2420
    %v2422 = vpop.f32.mrf.mxu0
    %v2423 = vadd.f32 %v2399, %v2422
    %2424 = vdwg.mxu0
    %2425 = vmatpush.msra.mxu0 0.0
    %2426 = vmatpush.msra.mxu0 0.0
    %2427 = vmatpush.msra.mxu0 0.0
    %2428 = vmatpush.msra.mxu0 0.0
    %2429 = vmatpush.msra.mxu0 0.0
    %2430 = vmatpush.msra.mxu0 0.0
    %2431 = vmatpush.msra.mxu0 0.0
    %2432 = vmatpush.msra.mxu0 0.0
    %2433 = vmatpush.msra.mxu0 0.0
    %2434 = vmatpush.msra.mxu0 0.0
    %2435 = vmatpush.msra.mxu0 0.0
    %2436 = vmatpush.msra.mxu0 0.0
    %2437 = vmatpush.msra.mxu0 0.0
    %2438 = vmatpush.msra.mxu0 0.0
    %2439 = vmatpush.msra.mxu0 0.0
    %v2440 = vand.u32 %v2026, 4294901760
    %v2441 = vsub.f32 %v2026, %v2440
    %v2442 = vand.u32 %v2441, 4294901760
    %2443 = vmatpush.msra.mxu0 %v2442
    %v2444 = vand.u32 %v2031, 4294901760
    %2445 = vmatmul.f32.gmra.mxu0 %v2444
    %v2446 = vpop.f32.mrf.mxu0
    %v2447 = vadd.f32 %v2423, %v2446
    %2448 = vdwg.mxu0
    %2449 = vmatpush.msra.mxu0 0.0
    %2450 = vmatpush.msra.mxu0 0.0
    %2451 = vmatpush.msra.mxu0 0.0
    %2452 = vmatpush.msra.mxu0 0.0
    %2453 = vmatpush.msra.mxu0 0.0
    %2454 = vmatpush.msra.mxu0 0.0
    %2455 = vmatpush.msra.mxu0 0.0
    %2456 = vmatpush.msra.mxu0 0.0
    %2457 = vmatpush.msra.mxu0 0.0
    %2458 = vmatpush.msra.mxu0 0.0
    %2459 = vmatpush.msra.mxu0 0.0
    %2460 = vmatpush.msra.mxu0 0.0
    %2461 = vmatpush.msra.mxu0 0.0
    %2462 = vmatpush.msra.mxu0 0.0
    %2463 = vmatpush.msra.mxu0 0.0
    %v2464 = vand.u32 %v2026, 4294901760
    %2465 = vmatpush.msra.mxu0 %v2464
    %v2466 = vand.u32 %v2031, 4294901760
    %2467 = vmatmul.f32.gmra.mxu0 %v2466
    %v2468 = vpop.f32.mrf.mxu0
    %v2469 = vadd.f32 %v2447, %v2468
    %2470 = vdwg.mxu0
    %2471 = vmatpush.msra.mxu0 0.0
    %2472 = vmatpush.msra.mxu0 0.0
    %2473 = vmatpush.msra.mxu0 0.0
    %2474 = vmatpush.msra.mxu0 0.0
    %2475 = vmatpush.msra.mxu0 0.0
    %2476 = vmatpush.msra.mxu0 0.0
    %2477 = vmatpush.msra.mxu0 0.0
    %2478 = vmatpush.msra.mxu0 0.0
    %2479 = vmatpush.msra.mxu0 0.0
    %2480 = vmatpush.msra.mxu0 0.0
    %2481 = vmatpush.msra.mxu0 0.0
    %2482 = vmatpush.msra.mxu0 0.0
    %2483 = vmatpush.msra.mxu0 0.0
    %2484 = vmatpush.msra.mxu0 0.0
    %2485 = vmatpush.msra.mxu0 0.0
    %v2486 = vand.u32 %v2027, 4294901760
    %2487 = vmatpush.msra.mxu0 %v2486
    %v2488 = vand.u32 %v2031, 4294901760
    %v2489 = vsub.f32 %v2031, %v2488
    %v2490 = vand.u32 %v2489, 4294901760
    %v2491 = vsub.f32 %v2489, %v2490
    %v2492 = vand.u32 %v2491, 4294901760
    %2493 = vmatmul.f32.gmra.mxu0 %v2492
    %v2494 = vpop.f32.mrf.mxu0
    %v2495 = vadd.f32 0.0, %v2494
    %2496 = vdwg.mxu0
    %2497 = vmatpush.msra.mxu0 0.0
    %2498 = vmatpush.msra.mxu0 0.0
    %2499 = vmatpush.msra.mxu0 0.0
    %2500 = vmatpush.msra.mxu0 0.0
    %2501 = vmatpush.msra.mxu0 0.0
    %2502 = vmatpush.msra.mxu0 0.0
    %2503 = vmatpush.msra.mxu0 0.0
    %2504 = vmatpush.msra.mxu0 0.0
    %2505 = vmatpush.msra.mxu0 0.0
    %2506 = vmatpush.msra.mxu0 0.0
    %2507 = vmatpush.msra.mxu0 0.0
    %2508 = vmatpush.msra.mxu0 0.0
    %2509 = vmatpush.msra.mxu0 0.0
    %2510 = vmatpush.msra.mxu0 0.0
    %2511 = vmatpush.msra.mxu0 0.0
    %v2512 = vand.u32 %v2027, 4294901760
    %v2513 = vsub.f32 %v2027, %v2512
    %v2514 = vand.u32 %v2513, 4294901760
    %v2515 = vsub.f32 %v2513, %v2514
    %v2516 = vand.u32 %v2515, 4294901760
    %2517 = vmatpush.msra.mxu0 %v2516
    %v2518 = vand.u32 %v2031, 4294901760
    %2519 = vmatmul.f32.gmra.mxu0 %v2518
    %v2520 = vpop.f32.mrf.mxu0
    %v2521 = vadd.f32 %v2495, %v2520
    %2522 = vdwg.mxu0
    %2523 = vmatpush.msra.mxu0 0.0
    %2524 = vmatpush.msra.mxu0 0.0
    %2525 = vmatpush.msra.mxu0 0.0
    %2526 = vmatpush.msra.mxu0 0.0
    %2527 = vmatpush.msra.mxu0 0.0
    %2528 = vmatpush.msra.mxu0 0.0
    %2529 = vmatpush.msra.mxu0 0.0
    %2530 = vmatpush.msra.mxu0 0.0
    %2531 = vmatpush.msra.mxu0 0.0
    %2532 = vmatpush.msra.mxu0 0.0
    %2533 = vmatpush.msra.mxu0 0.0
    %2534 = vmatpush.msra.mxu0 0.0
    %2535 = vmatpush.msra.mxu0 0.0
    %2536 = vmatpush.msra.mxu0 0.0
    %2537 = vmatpush.msra.mxu0 0.0
    %v2538 = vand.u32 %v2027, 4294901760
    %v2539 = vsub.f32 %v2027, %v2538
    %2540 = vmatpush.msra.mxu0 %v2539
    %v2541 = vand.u32 %v2031, 4294901760
    %v2542 = vsub.f32 %v2031, %v2541
    %2543 = vmatmul.f32.gmra.mxu0 %v2542
    %v2544 = vpop.f32.mrf.mxu0
    %v2545 = vadd.f32 %v2521, %v2544
    %2546 = vdwg.mxu0
    %2547 = vmatpush.msra.mxu0 0.0
    %2548 = vmatpush.msra.mxu0 0.0
    %2549 = vmatpush.msra.mxu0 0.0
    %2550 = vmatpush.msra.mxu0 0.0
    %2551 = vmatpush.msra.mxu0 0.0
    %2552 = vmatpush.msra.mxu0 0.0
    %2553 = vmatpush.msra.mxu0 0.0
    %2554 = vmatpush.msra.mxu0 0.0
    %2555 = vmatpush.msra.mxu0 0.0
    %2556 = vmatpush.msra.mxu0 0.0
    %2557 = vmatpush.msra.mxu0 0.0
    %2558 = vmatpush.msra.mxu0 0.0
    %2559 = vmatpush.msra.mxu0 0.0
    %2560 = vmatpush.msra.mxu0 0.0
    %2561 = vmatpush.msra.mxu0 0.0
    %v2562 = vand.u32 %v2027, 4294901760
    %2563 = vmatpush.msra.mxu0 %v2562
    %v2564 = vand.u32 %v2031, 4294901760
    %v2565 = vsub.f32 %v2031, %v2564
    %v2566 = vand.u32 %v2565, 4294901760
    %2567 = vmatmul.f32.gmra.mxu0 %v2566
    %v2568 = vpop.f32.mrf.mxu0
    %v2569 = vadd.f32 %v2545, %v2568
    %2570 = vdwg.mxu0
    %2571 = vmatpush.msra.mxu0 0.0
    %2572 = vmatpush.msra.mxu0 0.0
    %2573 = vmatpush.msra.mxu0 0.0
    %2574 = vmatpush.msra.mxu0 0.0
    %2575 = vmatpush.msra.mxu0 0.0
    %2576 = vmatpush.msra.mxu0 0.0
    %2577 = vmatpush.msra.mxu0 0.0
    %2578 = vmatpush.msra.mxu0 0.0
    %2579 = vmatpush.msra.mxu0 0.0
    %2580 = vmatpush.msra.mxu0 0.0
    %2581 = vmatpush.msra.mxu0 0.0
    %2582 = vmatpush.msra.mxu0 0.0
    %2583 = vmatpush.msra.mxu0 0.0
    %2584 = vmatpush.msra.mxu0 0.0
    %2585 = vmatpush.msra.mxu0 0.0
    %v2586 = vand.u32 %v2027, 4294901760
    %v2587 = vsub.f32 %v2027, %v2586
    %v2588 = vand.u32 %v2587, 4294901760
    %2589 = vmatpush.msra.mxu0 %v2588
    %v2590 = vand.u32 %v2031, 4294901760
    %2591 = vmatmul.f32.gmra.mxu0 %v2590
    %v2592 = vpop.f32.mrf.mxu0
    %v2593 = vadd.f32 %v2569, %v2592
    %2594 = vdwg.mxu0
    %2595 = vmatpush.msra.mxu0 0.0
    %2596 = vmatpush.msra.mxu0 0.0
    %2597 = vmatpush.msra.mxu0 0.0
    %2598 = vmatpush.msra.mxu0 0.0
    %2599 = vmatpush.msra.mxu0 0.0
    %2600 = vmatpush.msra.mxu0 0.0
    %2601 = vmatpush.msra.mxu0 0.0
    %2602 = vmatpush.msra.mxu0 0.0
    %2603 = vmatpush.msra.mxu0 0.0
    %2604 = vmatpush.msra.mxu0 0.0
    %2605 = vmatpush.msra.mxu0 0.0
    %2606 = vmatpush.msra.mxu0 0.0
    %2607 = vmatpush.msra.mxu0 0.0
    %2608 = vmatpush.msra.mxu0 0.0
    %2609 = vmatpush.msra.mxu0 0.0
    %v2610 = vand.u32 %v2027, 4294901760
    %2611 = vmatpush.msra.mxu0 %v2610
    %v2612 = vand.u32 %v2031, 4294901760
    %2613 = vmatmul.f32.gmra.mxu0 %v2612
    %v2614 = vpop.f32.mrf.mxu0
    %v2615 = vadd.f32 %v2593, %v2614
    %2616 = vdwg.mxu0
    %v2617 = vld [vmem:[%s9] sm:$0xf]
    %v2618 = vld [vmem:[%s10] sm:$0xf]
    %v2619 = vsel %vm87, %v2177, 0.0
    %v2620 = vsel %vm87, %v2323, 0.0
    %v2621 = vadd.f32 %v2619, %v2620
    %v2622 = vsel %vm87, %v2469, 0.0
    %v2623 = vadd.f32 %v2621, %v2622
    %v2624 = vsel %vm87, %v2615, 0.0
    %v2625 = vadd.f32 %v2623, %v2624
    %2626 = vadd.xlane.f32.xlu0 %v2625
    %v2627 = vpop.xlane.xlu0 %2626
    %v2628 = vmul.f32 %v2627, 0.001953125
    %v2629 = vsub.f32 %v2177, %v2628
    %v2630 = vsub.f32 %v2323, %v2628
    %v2631 = vsub.f32 %v2469, %v2628
    %v2632 = vsub.f32 %v2615, %v2628
    %v2633 = vmul.f32 %v2629, %v2629
    %v2634 = vmul.f32 %v2630, %v2630
    %v2635 = vmul.f32 %v2631, %v2631
    %v2636 = vmul.f32 %v2632, %v2632
    %v2637 = vsel %vm87, %v2633, 0.0
    %v2638 = vsel %vm87, %v2634, 0.0
    %v2639 = vadd.f32 %v2637, %v2638
    %v2640 = vsel %vm87, %v2635, 0.0
    %v2641 = vadd.f32 %v2639, %v2640
    %v2642 = vsel %vm87, %v2636, 0.0
    %v2643 = vadd.f32 %v2641, %v2642
    %2644 = vadd.xlane.f32.xlu0 %v2643
    %v2645 = vpop.xlane.xlu0 %2644
    %v2646 = vmul.f32 %v2645, 0.001953125
    %v2647 = vadd.f32 %v2646, 1e-05
    %v2648 = vrsqrt.pop %v2647
    %v2649 = vmul.f32 %v2648, %v2647
    %v2650 = vmul.f32 %v2649, %v2648
    %v2651 = vmul.f32 0.5, %v2650
    %v2652 = vsub.f32 1.5, %v2651
    %v2653 = vmul.f32 %v2648, %v2652
    %vm2654 = vweird.f32 %v2647
    %vm2655 = vweird.f32 %v2648
    %vm2656 = vmor %vm2654, %vm2655
    %v2657 = vsel %vm2656, %v2648, %v2653
    %v2658 = vmul.f32 %v2629, %v2657
    %v2659 = vmul.f32 %v2630, %v2657
    %v2660 = vmul.f32 %v2631, %v2657
    %v2661 = vmul.f32 %v2632, %v2657
    %2663 = vset.pattern.permute.xlu0 0
    %2664 = vperm.xlu0 %2663, %v2617
    %v2665 = vpop.permute.xlu0 %2664
    %v2667 = vmul.f32 %v2658, %v2665
    %v2668 = vmul.f32 %v2659, %v2665
    %v2669 = vmul.f32 %v2660, %v2665
    %v2670 = vmul.f32 %v2661, %v2665
    %2672 = vset.pattern.permute.xlu0 0
    %2673 = vperm.xlu0 %2672, %v2618
    %v2674 = vpop.permute.xlu0 %2673
    %v2676 = vadd.f32 %v2667, %v2674
    %v2677 = vadd.f32 %v2668, %v2674
    %v2678 = vadd.f32 %v2669, %v2674
    %v2679 = vadd.f32 %v2670, %v2674
    %v2680 = vmax.f32 %v2676, 0.0
    %v2681 = vmax.f32 %v2677, 0.0
    %v2682 = vmax.f32 %v2678, 0.0
    %v2683 = vmax.f32 %v2679, 0.0
    %2684 = vst [vmem:[#allocation1] ss:$2 sm:$0xff] %v71
    %v2685 = vld.sshfl [vmem:[#allocation1] sm:$0xff pattern:$0x75316420]
    %v2686 = vld.sshfl [vmem:[#allocation1 + $0x8] sm:$0xff pattern:$0x75316420]
    %v2689 = vadd.f32 %v2680, %v2685
    %v2690 = vadd.f32 %v2681, %v2686
    %v2693 = vrot.slane %v2690, 4
    %v2694 = vsel %vm87, %v2689, %v2693
    %2696 = vst [vmem:[#allocation7] sm:$0xff] %v2694
    %v2697 = vld [vmem:[%s72] sm:$0xff]
    %2699 = vst [vmem:[#allocation1] ss:$2 sm:$0xff] %v2697
    %v2700 = vld.sshfl [vmem:[#allocation1] sm:$0xff pattern:$0x75316420]
    %v2701 = vld.sshfl [vmem:[#allocation1 + $0x8] sm:$0xff pattern:$0x75316420]
    %v2704 = vadd.f32 %v2682, %v2700
    %v2705 = vadd.f32 %v2683, %v2701
    %v2708 = vrot.slane %v2705, 4
    %v2709 = vsel %vm87, %v2704, %v2708
    %s2711 = scalar_lea.vmem [#allocation7], 8
    %2712 = vst [vmem:[%s2711] sm:$0xff] %v2709
    // Predicated region
    $region54: #{tpu_custom_call.1} parent=1 // pred_check
      _
    $region55: #{tpu_custom_call.1} parent=1 // pred_check_branch
      %2714 = sbr.rel (0) target = $region57
    $region56: #{tpu_custom_call.1} parent=1 // pred_region
      %2716 = vsyncadd [#allocation4], 0
      %s2717 = sshll.u32 [#allocation7], 4
      %s2718 = int_to_ptr.vmem [resolvable:$true] %s2717
      %s2719 = sshll.u32 %s11, 4
      %s2720 = int_to_ptr.hbm [resolvable:$true] %s2719
      %2725 = dma.vmem_to_hbm [thread:$0]  %s2718, 256, %s2720, [#allocation4], 128, 128, 8
    $region57: #{tpu_custom_call.1} parent=1 // pred_fallthru
      _
    // Predicated region
    $region58: #{tpu_custom_call.1} parent=1 // pred_check
      _
    $region59: #{tpu_custom_call.1} parent=1 // pred_check_branch
      %2727 = sbr.rel (0) target = $region61
    $region60: #{tpu_custom_call.1} parent=1 // pred_region
      %2729 = dma.done [#allocation4], 256
    $region61: #{tpu_custom_call.1} parent=1 // pred_fallthru
      _
    %2730 = vsyncpa [#allocation3], 1
    %2731 = vsyncpa [#allocation6], 1
    %2732 = vsyncpa [#allocation4], 1

</llo_original>
